<compile_context>
chip_gen: v5e
topology: v5e:2x2
jax: 0.10.0
libtpu: 0.0.40
codegen_flags: <defaults>
</compile_context>

<pallas_src>
import functools

import jax
import jax.numpy as jnp
from jax.experimental import pallas as pl
from jax.experimental.pallas import tpu as pltpu

BN_EPS = 1e-5


def _lif_step(v, u, v_th, spike_dtype):
    """One LIF timestep (tau=2): charge, fire (Heaviside), hard reset to 0."""
    v = (v + u) * 0.5                            # v + (u - v)/tau with tau = 2
    fired = v >= v_th
    spike = jnp.where(fired, 1.0, 0.0).astype(spike_dtype)
    v = jnp.where(fired, 0.0, v)                 # hard reset
    return v, spike


def global_ssa_kernel(x_ref,
                      wqkv_ref, bqkv_ref,
                      wp_ref, bp_ref,
                      out_ref, *, num_heads):
    # x_ref / out_ref: (T, C, N) for one batch element (batch axis squeezed by BlockSpec).
    t_steps, dim, n_tok = out_ref.shape
    hd = dim // num_heads

    wqkv = wqkv_ref[...]                         # (3C, C)  BN scale pre-folded into weights
    bqkv = bqkv_ref[...]                         # (3C, 1)  folded BN shift
    wp = wp_ref[...]                             # (C, C)   BN scale pre-folded into weights
    bp = bp_ref[...]                             # (C, 1)   folded BN shift

    # LIF membrane potentials carried across the (short, unrolled) time loop.
    v_qkv = jnp.zeros((3 * dim, n_tok), jnp.float32)
    v_att = jnp.zeros((dim, n_tok), jnp.float32)
    v_prj = jnp.zeros((dim, n_tok), jnp.float32)

    for t in range(t_steps):
        # ---- fused q/k/v 1x1 conv + (folded) BN + LIF (threshold 1.0) ------------------
        # NOTE: default (bf16-pass) matmul precision; near-threshold spikes may differ
        # slightly from an f32 PyTorch reference.
        u = jnp.dot(wqkv, x_ref[t], preferred_element_type=jnp.float32)    # (3C, N)
        u = u + bqkv
        v_qkv, qkv = _lif_step(v_qkv, u, 1.0, jnp.bfloat16)                # {0,1} spikes

        q = qkv[0:dim, :]                        # (C, N), channel c = h*hd + d
        k = qkv[dim:2 * dim, :]
        v = qkv[2 * dim:3 * dim, :]
        qT = q.T                                 # (N, C): one transpose -> canonical matmuls

        # ---- per-head attention: attn = q^T k ; o = v @ attn^T (0.125 folded below) ----
        head_outs = []
        for h in range(num_heads):
            lo = h * hd
            attn = jnp.dot(qT[:, lo:lo + hd], k[lo:lo + hd, :],
                           preferred_element_type=jnp.float32)             # (N, N) counts
            attn = attn.astype(jnp.bfloat16)                               # exact: counts <= hd
            # o[d, n] = sum_m v[d, m] * attn[n, m]   -> lane-dense (hd, N) result
            o = jax.lax.dot_general(v[lo:lo + hd, :], attn,
                                    (((1,), (1,)), ((), ())),
                                    preferred_element_type=jnp.float32)
            head_outs.append(o)
        a = jnp.concatenate(head_outs, axis=0)                             # (C, N)

        # ---- attn_lif: PyTorch's `* 0.125` folded into the threshold (0.5 / 0.125) ----
        v_att, a_sp = _lif_step(v_att, a, 4.0, jnp.bfloat16)

        # ---- proj 1x1 conv + (folded) BN + LIF (threshold 1.0) -------------------------
        y = jnp.dot(wp, a_sp, preferred_element_type=jnp.float32)          # (C, N)
        y = y + bp
        v_prj, y_sp = _lif_step(v_prj, y, 1.0, out_ref.dtype)
        out_ref[t] = y_sp


def init_params(key, dim):
    """Deterministic params for the four Conv1x1 blocks.

    q/k/v conv weights are fused into one (3C, C) weight, and the eval-mode BatchNorm scale
    (gamma / sqrt(var + eps)) is folded into the conv weights here (done once, outside the
    kernel); only the per-channel shift remains for the kernel to add.
    """
    keys = jax.random.split(key, 12)
    ws, shs = [], []
    for i in range(4):                           # q, k, v, proj
        kw, kg, kb = keys[3 * i], keys[3 * i + 1], keys[3 * i + 2]
        # PyTorch Conv2d weight is (C_out, C_in, 1, 1); keep (C_out, C_in) for y = W @ x.
        w = jax.random.normal(kw, (dim, dim), jnp.float32) / jnp.sqrt(dim)
        gamma = 1.0 + 0.1 * jax.random.normal(kg, (dim,), jnp.float32)
        beta = 0.05 * jax.random.normal(kb, (dim,), jnp.float32)
        running_mean = jnp.zeros((dim,), jnp.float32)
        running_var = jnp.ones((dim,), jnp.float32)
        scale = gamma / jnp.sqrt(running_var + BN_EPS)
        shift = beta - running_mean * scale
        ws.append(w * scale[:, None])            # fold BN scale into the conv weight
        shs.append(shift)
    return {
        'w_qkv': jnp.concatenate(ws[:3], axis=0),                          # (3C, C)
        'shift_qkv': jnp.concatenate(shs[:3]).reshape(3 * dim, 1),
        'w_proj': ws[3],                                                   # (C, C)
        'shift_proj': shs[3].reshape(dim, 1),
    }


def global_ssa_forward(x_tbchw, params, num_heads):
    T, B, C, H, W = x_tbchw.shape
    assert C % num_heads == 0
    assert (C // num_heads) <= 256               # attn counts stay exact in bfloat16
    N = H * W
    # NCHW -> channel-major token layout (T, B, C, N): a pure reshape, no HBM transpose.
    x = x_tbchw.reshape(T, B, C, N)

    act_spec = pl.BlockSpec((T, pl.Squeezed(), C, N), lambda b: (0, b, 0, 0))
    wqkv_spec = pl.BlockSpec((3 * C, C), lambda b: (0, 0))
    bqkv_spec = pl.BlockSpec((3 * C, 1), lambda b: (0, 0))
    wp_spec = pl.BlockSpec((C, C), lambda b: (0, 0))
    bp_spec = pl.BlockSpec((C, 1), lambda b: (0, 0))

    out = pl.pallas_call(
        functools.partial(global_ssa_kernel, num_heads=num_heads),
        out_shape=jax.ShapeDtypeStruct((T, B, C, N), jnp.float32),
        grid=(B,),
        in_specs=[act_spec, wqkv_spec, bqkv_spec, wp_spec, bp_spec],
        out_specs=act_spec,
        compiler_params=pltpu.CompilerParams(
            dimension_semantics=("parallel",),
            vmem_limit_bytes=32 * 1024 * 1024),
    )(x, params['w_qkv'], params['shift_qkv'],
      params['w_proj'], params['shift_proj'])

    # back to (T, B, C, H, W) -- pure reshape, no transpose.
    return out.reshape(T, B, C, H, W)


if __name__ == "__main__":
    T, B, C, H, W = 2, 2, 32, 8, 8               # dim=32, num_heads=8 -> head_dim=4, N=64
    num_heads = 8

    key = jax.random.PRNGKey(0)
    kx, kp = jax.random.split(key)
    x = jax.random.normal(kx, (T, B, C, H, W), jnp.float32)
    params = init_params(kp, C)

    out = global_ssa_forward(x, params, num_heads)
    jax.block_until_ready(out)
    assert out.shape == (T, B, C, H, W), out.shape
    print("KERNEL_OK")
</pallas_src>

<mosaic_0001>
module attributes {stable_mosaic.version = 11 : i64} {
  func.func @global_ssa_kernel(%arg0: i32, %arg1: memref<2x1x32x64xf32, #tpu.memory_space<vmem>>, %arg2: memref<96x32xf32, #tpu.memory_space<vmem>>, %arg3: memref<96x1xf32, #tpu.memory_space<vmem>>, %arg4: memref<32x32xf32, #tpu.memory_space<vmem>>, %arg5: memref<32x1xf32, #tpu.memory_space<vmem>>, %arg6: memref<2x1x32x64xf32, #tpu.memory_space<vmem>>) attributes {dimension_semantics = [#tpu.dimension_semantics<parallel>], iteration_bounds = array<i64: 2>, scalar_prefetch = 0 : i64, scratch_operands = 0 : i64, tpu.core_type = #tpu.core_type<tc>, window_params = [{transform_indices = @transform_0, window_bounds = array<i64: 2, 1, 32, 64>}, {pipeline_mode = #tpu.pipeline_mode<synchronous>, transform_indices = @transform_1, window_bounds = array<i64: 96, 32>}, {pipeline_mode = #tpu.pipeline_mode<synchronous>, transform_indices = @transform_2, window_bounds = array<i64: 96, 1>}, {pipeline_mode = #tpu.pipeline_mode<synchronous>, transform_indices = @transform_3, window_bounds = array<i64: 32, 32>}, {pipeline_mode = #tpu.pipeline_mode<synchronous>, transform_indices = @transform_4, window_bounds = array<i64: 32, 1>}, {transform_indices = @transform_5, window_bounds = array<i64: 2, 1, 32, 64>}]} {
    %c0 = arith.constant 0 : index
    %c0_0 = arith.constant 0 : index
    %0 = vector.load %arg2[%c0, %c0_0] : memref<96x32xf32, #tpu.memory_space<vmem>>, vector<96x32xf32>
    %c0_1 = arith.constant 0 : index
    %c0_2 = arith.constant 0 : index
    %1 = vector.load %arg3[%c0_1, %c0_2] : memref<96x1xf32, #tpu.memory_space<vmem>>, vector<96x1xf32>
    %c0_3 = arith.constant 0 : index
    %c0_4 = arith.constant 0 : index
    %2 = vector.load %arg4[%c0_3, %c0_4] : memref<32x32xf32, #tpu.memory_space<vmem>>, vector<32x32xf32>
    %c0_5 = arith.constant 0 : index
    %c0_6 = arith.constant 0 : index
    %3 = vector.load %arg5[%c0_5, %c0_6] : memref<32x1xf32, #tpu.memory_space<vmem>>, vector<32x1xf32>
    %cst = arith.constant 0.000000e+00 : f32
    %4 = vector.broadcast %cst : f32 to vector<96x64xf32>
    %cst_7 = arith.constant 0.000000e+00 : f32
    %5 = vector.broadcast %cst_7 : f32 to vector<32x64xf32>
    %cst_8 = arith.constant 0.000000e+00 : f32
    %6 = vector.broadcast %cst_8 : f32 to vector<32x64xf32>
    %c0_9 = arith.constant 0 : index
    %c0_10 = arith.constant 0 : index
    %c0_11 = arith.constant 0 : index
    %c0_12 = arith.constant 0 : index
    %7 = vector.load %arg1[%c0_9, %c0_10, %c0_11, %c0_12] : memref<2x1x32x64xf32, #tpu.memory_space<vmem>>, vector<1x1x32x64xf32>
    %8 = vector.shape_cast %7 : vector<1x1x32x64xf32> to vector<32x64xf32>
    %cst_13 = arith.constant dense<0.000000e+00> : vector<96x64xf32>
    %9 = tpu.matmul %0, %8, %cst_13 {dimension_numbers = #tpu.dot_dimension_numbers<[1], [0], [0], [1], [0, 0, 1, 1], [], []>} : vector<96x32xf32>, vector<32x64xf32>, vector<96x64xf32> -> vector<96x64xf32>
    %10 = vector.broadcast %1 : vector<96x1xf32> to vector<96x64xf32>
    %11 = arith.addf %9, %10 : vector<96x64xf32>
    %12 = arith.addf %4, %11 : vector<96x64xf32>
    %cst_14 = arith.constant 5.000000e-01 : f32
    %13 = vector.broadcast %cst_14 : f32 to vector<96x64xf32>
    %14 = arith.mulf %12, %13 : vector<96x64xf32>
    %cst_15 = arith.constant 1.000000e+00 : f32
    %15 = vector.broadcast %cst_15 : f32 to vector<96x64xf32>
    %16 = arith.cmpf oge, %14, %15 : vector<96x64xf32>
    %cst_16 = arith.constant 1.000000e+00 : f32
    %cst_17 = arith.constant 0.000000e+00 : f32
    %17 = vector.broadcast %cst_16 : f32 to vector<96x64xf32>
    %18 = vector.broadcast %cst_17 : f32 to vector<96x64xf32>
    %19 = arith.select %16, %17, %18 : vector<96x64xi1>, vector<96x64xf32>
    %20 = arith.truncf %19 : vector<96x64xf32> to vector<96x64xbf16>
    %cst_18 = arith.constant 0.000000e+00 : f32
    %21 = vector.broadcast %cst_18 : f32 to vector<96x64xf32>
    %22 = arith.select %16, %21, %14 : vector<96x64xi1>, vector<96x64xf32>
    %23 = vector.extract_strided_slice %20 {offsets = [0, 0], sizes = [32, 64], strides = [1, 1]} : vector<96x64xbf16> to vector<32x64xbf16>
    %24 = vector.extract_strided_slice %20 {offsets = [32, 0], sizes = [32, 64], strides = [1, 1]} : vector<96x64xbf16> to vector<32x64xbf16>
    %25 = vector.extract_strided_slice %20 {offsets = [64, 0], sizes = [32, 64], strides = [1, 1]} : vector<96x64xbf16> to vector<32x64xbf16>
    %26 = tpu.transpose %23, [1, 0] : vector<32x64xbf16> -> vector<64x32xbf16>
    %27 = vector.extract_strided_slice %26 {offsets = [0, 0], sizes = [64, 4], strides = [1, 1]} : vector<64x32xbf16> to vector<64x4xbf16>
    %28 = vector.extract_strided_slice %24 {offsets = [0, 0], sizes = [4, 64], strides = [1, 1]} : vector<32x64xbf16> to vector<4x64xbf16>
    %cst_19 = arith.constant dense<0.000000e+00> : vector<64x64xf32>
    %29 = tpu.matmul %27, %28, %cst_19 {dimension_numbers = #tpu.dot_dimension_numbers<[1], [0], [0], [1], [0, 0, 1, 1], [], []>} : vector<64x4xbf16>, vector<4x64xbf16>, vector<64x64xf32> -> vector<64x64xf32>
    %30 = arith.truncf %29 : vector<64x64xf32> to vector<64x64xbf16>
    %31 = vector.extract_strided_slice %25 {offsets = [0, 0], sizes = [4, 64], strides = [1, 1]} : vector<32x64xbf16> to vector<4x64xbf16>
    %cst_20 = arith.constant dense<0.000000e+00> : vector<4x64xf32>
    %32 = tpu.matmul %31, %30, %cst_20 {dimension_numbers = #tpu.dot_dimension_numbers<[1], [1], [0], [0], [0, 0, 1, 0], [], []>} : vector<4x64xbf16>, vector<64x64xbf16>, vector<4x64xf32> -> vector<4x64xf32>
    %33 = vector.extract_strided_slice %26 {offsets = [0, 4], sizes = [64, 4], strides = [1, 1]} : vector<64x32xbf16> to vector<64x4xbf16>
    %34 = vector.extract_strided_slice %24 {offsets = [4, 0], sizes = [4, 64], strides = [1, 1]} : vector<32x64xbf16> to vector<4x64xbf16>
    %cst_21 = arith.constant dense<0.000000e+00> : vector<64x64xf32>
    %35 = tpu.matmul %33, %34, %cst_21 {dimension_numbers = #tpu.dot_dimension_numbers<[1], [0], [0], [1], [0, 0, 1, 1], [], []>} : vector<64x4xbf16>, vector<4x64xbf16>, vector<64x64xf32> -> vector<64x64xf32>
    %36 = arith.truncf %35 : vector<64x64xf32> to vector<64x64xbf16>
    %37 = vector.extract_strided_slice %25 {offsets = [4, 0], sizes = [4, 64], strides = [1, 1]} : vector<32x64xbf16> to vector<4x64xbf16>
    %cst_22 = arith.constant dense<0.000000e+00> : vector<4x64xf32>
    %38 = tpu.matmul %37, %36, %cst_22 {dimension_numbers = #tpu.dot_dimension_numbers<[1], [1], [0], [0], [0, 0, 1, 0], [], []>} : vector<4x64xbf16>, vector<64x64xbf16>, vector<4x64xf32> -> vector<4x64xf32>
    %39 = vector.extract_strided_slice %26 {offsets = [0, 8], sizes = [64, 4], strides = [1, 1]} : vector<64x32xbf16> to vector<64x4xbf16>
    %40 = vector.extract_strided_slice %24 {offsets = [8, 0], sizes = [4, 64], strides = [1, 1]} : vector<32x64xbf16> to vector<4x64xbf16>
    %cst_23 = arith.constant dense<0.000000e+00> : vector<64x64xf32>
    %41 = tpu.matmul %39, %40, %cst_23 {dimension_numbers = #tpu.dot_dimension_numbers<[1], [0], [0], [1], [0, 0, 1, 1], [], []>} : vector<64x4xbf16>, vector<4x64xbf16>, vector<64x64xf32> -> vector<64x64xf32>
    %42 = arith.truncf %41 : vector<64x64xf32> to vector<64x64xbf16>
    %43 = vector.extract_strided_slice %25 {offsets = [8, 0], sizes = [4, 64], strides = [1, 1]} : vector<32x64xbf16> to vector<4x64xbf16>
    %cst_24 = arith.constant dense<0.000000e+00> : vector<4x64xf32>
    %44 = tpu.matmul %43, %42, %cst_24 {dimension_numbers = #tpu.dot_dimension_numbers<[1], [1], [0], [0], [0, 0, 1, 0], [], []>} : vector<4x64xbf16>, vector<64x64xbf16>, vector<4x64xf32> -> vector<4x64xf32>
    %45 = vector.extract_strided_slice %26 {offsets = [0, 12], sizes = [64, 4], strides = [1, 1]} : vector<64x32xbf16> to vector<64x4xbf16>
    %46 = vector.extract_strided_slice %24 {offsets = [12, 0], sizes = [4, 64], strides = [1, 1]} : vector<32x64xbf16> to vector<4x64xbf16>
    %cst_25 = arith.constant dense<0.000000e+00> : vector<64x64xf32>
    %47 = tpu.matmul %45, %46, %cst_25 {dimension_numbers = #tpu.dot_dimension_numbers<[1], [0], [0], [1], [0, 0, 1, 1], [], []>} : vector<64x4xbf16>, vector<4x64xbf16>, vector<64x64xf32> -> vector<64x64xf32>
    %48 = arith.truncf %47 : vector<64x64xf32> to vector<64x64xbf16>
    %49 = vector.extract_strided_slice %25 {offsets = [12, 0], sizes = [4, 64], strides = [1, 1]} : vector<32x64xbf16> to vector<4x64xbf16>
    %cst_26 = arith.constant dense<0.000000e+00> : vector<4x64xf32>
    %50 = tpu.matmul %49, %48, %cst_26 {dimension_numbers = #tpu.dot_dimension_numbers<[1], [1], [0], [0], [0, 0, 1, 0], [], []>} : vector<4x64xbf16>, vector<64x64xbf16>, vector<4x64xf32> -> vector<4x64xf32>
    %51 = vector.extract_strided_slice %26 {offsets = [0, 16], sizes = [64, 4], strides = [1, 1]} : vector<64x32xbf16> to vector<64x4xbf16>
    %52 = vector.extract_strided_slice %24 {offsets = [16, 0], sizes = [4, 64], strides = [1, 1]} : vector<32x64xbf16> to vector<4x64xbf16>
    %cst_27 = arith.constant dense<0.000000e+00> : vector<64x64xf32>
    %53 = tpu.matmul %51, %52, %cst_27 {dimension_numbers = #tpu.dot_dimension_numbers<[1], [0], [0], [1], [0, 0, 1, 1], [], []>} : vector<64x4xbf16>, vector<4x64xbf16>, vector<64x64xf32> -> vector<64x64xf32>
    %54 = arith.truncf %53 : vector<64x64xf32> to vector<64x64xbf16>
    %55 = vector.extract_strided_slice %25 {offsets = [16, 0], sizes = [4, 64], strides = [1, 1]} : vector<32x64xbf16> to vector<4x64xbf16>
    %cst_28 = arith.constant dense<0.000000e+00> : vector<4x64xf32>
    %56 = tpu.matmul %55, %54, %cst_28 {dimension_numbers = #tpu.dot_dimension_numbers<[1], [1], [0], [0], [0, 0, 1, 0], [], []>} : vector<4x64xbf16>, vector<64x64xbf16>, vector<4x64xf32> -> vector<4x64xf32>
    %57 = vector.extract_strided_slice %26 {offsets = [0, 20], sizes = [64, 4], strides = [1, 1]} : vector<64x32xbf16> to vector<64x4xbf16>
    %58 = vector.extract_strided_slice %24 {offsets = [20, 0], sizes = [4, 64], strides = [1, 1]} : vector<32x64xbf16> to vector<4x64xbf16>
    %cst_29 = arith.constant dense<0.000000e+00> : vector<64x64xf32>
    %59 = tpu.matmul %57, %58, %cst_29 {dimension_numbers = #tpu.dot_dimension_numbers<[1], [0], [0], [1], [0, 0, 1, 1], [], []>} : vector<64x4xbf16>, vector<4x64xbf16>, vector<64x64xf32> -> vector<64x64xf32>
    %60 = arith.truncf %59 : vector<64x64xf32> to vector<64x64xbf16>
    %61 = vector.extract_strided_slice %25 {offsets = [20, 0], sizes = [4, 64], strides = [1, 1]} : vector<32x64xbf16> to vector<4x64xbf16>
    %cst_30 = arith.constant dense<0.000000e+00> : vector<4x64xf32>
    %62 = tpu.matmul %61, %60, %cst_30 {dimension_numbers = #tpu.dot_dimension_numbers<[1], [1], [0], [0], [0, 0, 1, 0], [], []>} : vector<4x64xbf16>, vector<64x64xbf16>, vector<4x64xf32> -> vector<4x64xf32>
    %63 = vector.extract_strided_slice %26 {offsets = [0, 24], sizes = [64, 4], strides = [1, 1]} : vector<64x32xbf16> to vector<64x4xbf16>
    %64 = vector.extract_strided_slice %24 {offsets = [24, 0], sizes = [4, 64], strides = [1, 1]} : vector<32x64xbf16> to vector<4x64xbf16>
    %cst_31 = arith.constant dense<0.000000e+00> : vector<64x64xf32>
    %65 = tpu.matmul %63, %64, %cst_31 {dimension_numbers = #tpu.dot_dimension_numbers<[1], [0], [0], [1], [0, 0, 1, 1], [], []>} : vector<64x4xbf16>, vector<4x64xbf16>, vector<64x64xf32> -> vector<64x64xf32>
    %66 = arith.truncf %65 : vector<64x64xf32> to vector<64x64xbf16>
    %67 = vector.extract_strided_slice %25 {offsets = [24, 0], sizes = [4, 64], strides = [1, 1]} : vector<32x64xbf16> to vector<4x64xbf16>
    %cst_32 = arith.constant dense<0.000000e+00> : vector<4x64xf32>
    %68 = tpu.matmul %67, %66, %cst_32 {dimension_numbers = #tpu.dot_dimension_numbers<[1], [1], [0], [0], [0, 0, 1, 0], [], []>} : vector<4x64xbf16>, vector<64x64xbf16>, vector<4x64xf32> -> vector<4x64xf32>
    %69 = vector.extract_strided_slice %26 {offsets = [0, 28], sizes = [64, 4], strides = [1, 1]} : vector<64x32xbf16> to vector<64x4xbf16>
    %70 = vector.extract_strided_slice %24 {offsets = [28, 0], sizes = [4, 64], strides = [1, 1]} : vector<32x64xbf16> to vector<4x64xbf16>
    %cst_33 = arith.constant dense<0.000000e+00> : vector<64x64xf32>
    %71 = tpu.matmul %69, %70, %cst_33 {dimension_numbers = #tpu.dot_dimension_numbers<[1], [0], [0], [1], [0, 0, 1, 1], [], []>} : vector<64x4xbf16>, vector<4x64xbf16>, vector<64x64xf32> -> vector<64x64xf32>
    %72 = arith.truncf %71 : vector<64x64xf32> to vector<64x64xbf16>
    %73 = vector.extract_strided_slice %25 {offsets = [28, 0], sizes = [4, 64], strides = [1, 1]} : vector<32x64xbf16> to vector<4x64xbf16>
    %cst_34 = arith.constant dense<0.000000e+00> : vector<4x64xf32>
    %74 = tpu.matmul %73, %72, %cst_34 {dimension_numbers = #tpu.dot_dimension_numbers<[1], [1], [0], [0], [0, 0, 1, 0], [], []>} : vector<4x64xbf16>, vector<64x64xbf16>, vector<4x64xf32> -> vector<4x64xf32>
    %75 = tpu.concatenate %32, %38, %44, %50, %56, %62, %68, %74 in 0 : vector<4x64xf32>, vector<4x64xf32>, vector<4x64xf32>, vector<4x64xf32>, vector<4x64xf32>, vector<4x64xf32>, vector<4x64xf32>, vector<4x64xf32> -> vector<32x64xf32>
    %76 = arith.addf %5, %75 : vector<32x64xf32>
    %cst_35 = arith.constant 5.000000e-01 : f32
    %77 = vector.broadcast %cst_35 : f32 to vector<32x64xf32>
    %78 = arith.mulf %76, %77 : vector<32x64xf32>
    %cst_36 = arith.constant 4.000000e+00 : f32
    %79 = vector.broadcast %cst_36 : f32 to vector<32x64xf32>
    %80 = arith.cmpf oge, %78, %79 : vector<32x64xf32>
    %cst_37 = arith.constant 1.000000e+00 : f32
    %cst_38 = arith.constant 0.000000e+00 : f32
    %81 = vector.broadcast %cst_37 : f32 to vector<32x64xf32>
    %82 = vector.broadcast %cst_38 : f32 to vector<32x64xf32>
    %83 = arith.select %80, %81, %82 : vector<32x64xi1>, vector<32x64xf32>
    %84 = arith.truncf %83 : vector<32x64xf32> to vector<32x64xbf16>
    %cst_39 = arith.constant 0.000000e+00 : f32
    %85 = vector.broadcast %cst_39 : f32 to vector<32x64xf32>
    %86 = arith.select %80, %85, %78 : vector<32x64xi1>, vector<32x64xf32>
    %cst_40 = arith.constant dense<0.000000e+00> : vector<32x64xf32>
    %87 = tpu.matmul %2, %84, %cst_40 {dimension_numbers = #tpu.dot_dimension_numbers<[1], [0], [0], [1], [0, 0, 1, 1], [], []>} : vector<32x32xf32>, vector<32x64xbf16>, vector<32x64xf32> -> vector<32x64xf32>
    %88 = vector.broadcast %3 : vector<32x1xf32> to vector<32x64xf32>
    %89 = arith.addf %87, %88 : vector<32x64xf32>
    %90 = arith.addf %6, %89 : vector<32x64xf32>
    %cst_41 = arith.constant 5.000000e-01 : f32
    %91 = vector.broadcast %cst_41 : f32 to vector<32x64xf32>
    %92 = arith.mulf %90, %91 : vector<32x64xf32>
    %cst_42 = arith.constant 1.000000e+00 : f32
    %93 = vector.broadcast %cst_42 : f32 to vector<32x64xf32>
    %94 = arith.cmpf oge, %92, %93 : vector<32x64xf32>
    %cst_43 = arith.constant 1.000000e+00 : f32
    %cst_44 = arith.constant 0.000000e+00 : f32
    %95 = vector.broadcast %cst_43 : f32 to vector<32x64xf32>
    %96 = vector.broadcast %cst_44 : f32 to vector<32x64xf32>
    %97 = arith.select %94, %95, %96 : vector<32x64xi1>, vector<32x64xf32>
    %cst_45 = arith.constant 0.000000e+00 : f32
    %98 = vector.broadcast %cst_45 : f32 to vector<32x64xf32>
    %99 = arith.select %94, %98, %92 : vector<32x64xi1>, vector<32x64xf32>
    %c0_46 = arith.constant 0 : index
    %c0_47 = arith.constant 0 : index
    %c0_48 = arith.constant 0 : index
    %c0_49 = arith.constant 0 : index
    %100 = vector.load %arg6[%c0_46, %c0_47, %c0_48, %c0_49] : memref<2x1x32x64xf32, #tpu.memory_space<vmem>>, vector<1x1x32x64xf32>
    %101 = vector.shape_cast %100 : vector<1x1x32x64xf32> to vector<32x64xf32>
    %102 = vector.shape_cast %97 : vector<32x64xf32> to vector<1x1x32x64xf32>
    tpu.vector_store %arg6[%c0_46, %c0_47, %c0_48, %c0_49], %102 {strides = array<i32>} : memref<2x1x32x64xf32, #tpu.memory_space<vmem>>, vector<1x1x32x64xf32>,
    %c1 = arith.constant 1 : index
    %c0_50 = arith.constant 0 : index
    %c0_51 = arith.constant 0 : index
    %c0_52 = arith.constant 0 : index
    %103 = vector.load %arg1[%c1, %c0_50, %c0_51, %c0_52] : memref<2x1x32x64xf32, #tpu.memory_space<vmem>>, vector<1x1x32x64xf32>
    %104 = vector.shape_cast %103 : vector<1x1x32x64xf32> to vector<32x64xf32>
    %cst_53 = arith.constant dense<0.000000e+00> : vector<96x64xf32>
    %105 = tpu.matmul %0, %104, %cst_53 {dimension_numbers = #tpu.dot_dimension_numbers<[1], [0], [0], [1], [0, 0, 1, 1], [], []>} : vector<96x32xf32>, vector<32x64xf32>, vector<96x64xf32> -> vector<96x64xf32>
    %106 = vector.broadcast %1 : vector<96x1xf32> to vector<96x64xf32>
    %107 = arith.addf %105, %106 : vector<96x64xf32>
    %108 = arith.addf %22, %107 : vector<96x64xf32>
    %cst_54 = arith.constant 5.000000e-01 : f32
    %109 = vector.broadcast %cst_54 : f32 to vector<96x64xf32>
    %110 = arith.mulf %108, %109 : vector<96x64xf32>
    %cst_55 = arith.constant 1.000000e+00 : f32
    %111 = vector.broadcast %cst_55 : f32 to vector<96x64xf32>
    %112 = arith.cmpf oge, %110, %111 : vector<96x64xf32>
    %cst_56 = arith.constant 1.000000e+00 : f32
    %cst_57 = arith.constant 0.000000e+00 : f32
    %113 = vector.broadcast %cst_56 : f32 to vector<96x64xf32>
    %114 = vector.broadcast %cst_57 : f32 to vector<96x64xf32>
    %115 = arith.select %112, %113, %114 : vector<96x64xi1>, vector<96x64xf32>
    %116 = arith.truncf %115 : vector<96x64xf32> to vector<96x64xbf16>
    %117 = vector.extract_strided_slice %116 {offsets = [0, 0], sizes = [32, 64], strides = [1, 1]} : vector<96x64xbf16> to vector<32x64xbf16>
    %118 = vector.extract_strided_slice %116 {offsets = [32, 0], sizes = [32, 64], strides = [1, 1]} : vector<96x64xbf16> to vector<32x64xbf16>
    %119 = vector.extract_strided_slice %116 {offsets = [64, 0], sizes = [32, 64], strides = [1, 1]} : vector<96x64xbf16> to vector<32x64xbf16>
    %120 = tpu.transpose %117, [1, 0] : vector<32x64xbf16> -> vector<64x32xbf16>
    %121 = vector.extract_strided_slice %120 {offsets = [0, 0], sizes = [64, 4], strides = [1, 1]} : vector<64x32xbf16> to vector<64x4xbf16>
    %122 = vector.extract_strided_slice %118 {offsets = [0, 0], sizes = [4, 64], strides = [1, 1]} : vector<32x64xbf16> to vector<4x64xbf16>
    %cst_58 = arith.constant dense<0.000000e+00> : vector<64x64xf32>
    %123 = tpu.matmul %121, %122, %cst_58 {dimension_numbers = #tpu.dot_dimension_numbers<[1], [0], [0], [1], [0, 0, 1, 1], [], []>} : vector<64x4xbf16>, vector<4x64xbf16>, vector<64x64xf32> -> vector<64x64xf32>
    %124 = arith.truncf %123 : vector<64x64xf32> to vector<64x64xbf16>
    %125 = vector.extract_strided_slice %119 {offsets = [0, 0], sizes = [4, 64], strides = [1, 1]} : vector<32x64xbf16> to vector<4x64xbf16>
    %cst_59 = arith.constant dense<0.000000e+00> : vector<4x64xf32>
    %126 = tpu.matmul %125, %124, %cst_59 {dimension_numbers = #tpu.dot_dimension_numbers<[1], [1], [0], [0], [0, 0, 1, 0], [], []>} : vector<4x64xbf16>, vector<64x64xbf16>, vector<4x64xf32> -> vector<4x64xf32>
    %127 = vector.extract_strided_slice %120 {offsets = [0, 4], sizes = [64, 4], strides = [1, 1]} : vector<64x32xbf16> to vector<64x4xbf16>
    %128 = vector.extract_strided_slice %118 {offsets = [4, 0], sizes = [4, 64], strides = [1, 1]} : vector<32x64xbf16> to vector<4x64xbf16>
    %cst_60 = arith.constant dense<0.000000e+00> : vector<64x64xf32>
    %129 = tpu.matmul %127, %128, %cst_60 {dimension_numbers = #tpu.dot_dimension_numbers<[1], [0], [0], [1], [0, 0, 1, 1], [], []>} : vector<64x4xbf16>, vector<4x64xbf16>, vector<64x64xf32> -> vector<64x64xf32>
    %130 = arith.truncf %129 : vector<64x64xf32> to vector<64x64xbf16>
    %131 = vector.extract_strided_slice %119 {offsets = [4, 0], sizes = [4, 64], strides = [1, 1]} : vector<32x64xbf16> to vector<4x64xbf16>
    %cst_61 = arith.constant dense<0.000000e+00> : vector<4x64xf32>
    %132 = tpu.matmul %131, %130, %cst_61 {dimension_numbers = #tpu.dot_dimension_numbers<[1], [1], [0], [0], [0, 0, 1, 0], [], []>} : vector<4x64xbf16>, vector<64x64xbf16>, vector<4x64xf32> -> vector<4x64xf32>
    %133 = vector.extract_strided_slice %120 {offsets = [0, 8], sizes = [64, 4], strides = [1, 1]} : vector<64x32xbf16> to vector<64x4xbf16>
    %134 = vector.extract_strided_slice %118 {offsets = [8, 0], sizes = [4, 64], strides = [1, 1]} : vector<32x64xbf16> to vector<4x64xbf16>
    %cst_62 = arith.constant dense<0.000000e+00> : vector<64x64xf32>
    %135 = tpu.matmul %133, %134, %cst_62 {dimension_numbers = #tpu.dot_dimension_numbers<[1], [0], [0], [1], [0, 0, 1, 1], [], []>} : vector<64x4xbf16>, vector<4x64xbf16>, vector<64x64xf32> -> vector<64x64xf32>
    %136 = arith.truncf %135 : vector<64x64xf32> to vector<64x64xbf16>
    %137 = vector.extract_strided_slice %119 {offsets = [8, 0], sizes = [4, 64], strides = [1, 1]} : vector<32x64xbf16> to vector<4x64xbf16>
    %cst_63 = arith.constant dense<0.000000e+00> : vector<4x64xf32>
    %138 = tpu.matmul %137, %136, %cst_63 {dimension_numbers = #tpu.dot_dimension_numbers<[1], [1], [0], [0], [0, 0, 1, 0], [], []>} : vector<4x64xbf16>, vector<64x64xbf16>, vector<4x64xf32> -> vector<4x64xf32>
    %139 = vector.extract_strided_slice %120 {offsets = [0, 12], sizes = [64, 4], strides = [1, 1]} : vector<64x32xbf16> to vector<64x4xbf16>
    %140 = vector.extract_strided_slice %118 {offsets = [12, 0], sizes = [4, 64], strides = [1, 1]} : vector<32x64xbf16> to vector<4x64xbf16>
    %cst_64 = arith.constant dense<0.000000e+00> : vector<64x64xf32>
    %141 = tpu.matmul %139, %140, %cst_64 {dimension_numbers = #tpu.dot_dimension_numbers<[1], [0], [0], [1], [0, 0, 1, 1], [], []>} : vector<64x4xbf16>, vector<4x64xbf16>, vector<64x64xf32> -> vector<64x64xf32>
    %142 = arith.truncf %141 : vector<64x64xf32> to vector<64x64xbf16>
    %143 = vector.extract_strided_slice %119 {offsets = [12, 0], sizes = [4, 64], strides = [1, 1]} : vector<32x64xbf16> to vector<4x64xbf16>
    %cst_65 = arith.constant dense<0.000000e+00> : vector<4x64xf32>
    %144 = tpu.matmul %143, %142, %cst_65 {dimension_numbers = #tpu.dot_dimension_numbers<[1], [1], [0], [0], [0, 0, 1, 0], [], []>} : vector<4x64xbf16>, vector<64x64xbf16>, vector<4x64xf32> -> vector<4x64xf32>
    %145 = vector.extract_strided_slice %120 {offsets = [0, 16], sizes = [64, 4], strides = [1, 1]} : vector<64x32xbf16> to vector<64x4xbf16>
    %146 = vector.extract_strided_slice %118 {offsets = [16, 0], sizes = [4, 64], strides = [1, 1]} : vector<32x64xbf16> to vector<4x64xbf16>
    %cst_66 = arith.constant dense<0.000000e+00> : vector<64x64xf32>
    %147 = tpu.matmul %145, %146, %cst_66 {dimension_numbers = #tpu.dot_dimension_numbers<[1], [0], [0], [1], [0, 0, 1, 1], [], []>} : vector<64x4xbf16>, vector<4x64xbf16>, vector<64x64xf32> -> vector<64x64xf32>
    %148 = arith.truncf %147 : vector<64x64xf32> to vector<64x64xbf16>
    %149 = vector.extract_strided_slice %119 {offsets = [16, 0], sizes = [4, 64], strides = [1, 1]} : vector<32x64xbf16> to vector<4x64xbf16>
    %cst_67 = arith.constant dense<0.000000e+00> : vector<4x64xf32>
    %150 = tpu.matmul %149, %148, %cst_67 {dimension_numbers = #tpu.dot_dimension_numbers<[1], [1], [0], [0], [0, 0, 1, 0], [], []>} : vector<4x64xbf16>, vector<64x64xbf16>, vector<4x64xf32> -> vector<4x64xf32>
    %151 = vector.extract_strided_slice %120 {offsets = [0, 20], sizes = [64, 4], strides = [1, 1]} : vector<64x32xbf16> to vector<64x4xbf16>
    %152 = vector.extract_strided_slice %118 {offsets = [20, 0], sizes = [4, 64], strides = [1, 1]} : vector<32x64xbf16> to vector<4x64xbf16>
    %cst_68 = arith.constant dense<0.000000e+00> : vector<64x64xf32>
    %153 = tpu.matmul %151, %152, %cst_68 {dimension_numbers = #tpu.dot_dimension_numbers<[1], [0], [0], [1], [0, 0, 1, 1], [], []>} : vector<64x4xbf16>, vector<4x64xbf16>, vector<64x64xf32> -> vector<64x64xf32>
    %154 = arith.truncf %153 : vector<64x64xf32> to vector<64x64xbf16>
    %155 = vector.extract_strided_slice %119 {offsets = [20, 0], sizes = [4, 64], strides = [1, 1]} : vector<32x64xbf16> to vector<4x64xbf16>
    %cst_69 = arith.constant dense<0.000000e+00> : vector<4x64xf32>
    %156 = tpu.matmul %155, %154, %cst_69 {dimension_numbers = #tpu.dot_dimension_numbers<[1], [1], [0], [0], [0, 0, 1, 0], [], []>} : vector<4x64xbf16>, vector<64x64xbf16>, vector<4x64xf32> -> vector<4x64xf32>
    %157 = vector.extract_strided_slice %120 {offsets = [0, 24], sizes = [64, 4], strides = [1, 1]} : vector<64x32xbf16> to vector<64x4xbf16>
    %158 = vector.extract_strided_slice %118 {offsets = [24, 0], sizes = [4, 64], strides = [1, 1]} : vector<32x64xbf16> to vector<4x64xbf16>
    %cst_70 = arith.constant dense<0.000000e+00> : vector<64x64xf32>
    %159 = tpu.matmul %157, %158, %cst_70 {dimension_numbers = #tpu.dot_dimension_numbers<[1], [0], [0], [1], [0, 0, 1, 1], [], []>} : vector<64x4xbf16>, vector<4x64xbf16>, vector<64x64xf32> -> vector<64x64xf32>
    %160 = arith.truncf %159 : vector<64x64xf32> to vector<64x64xbf16>
    %161 = vector.extract_strided_slice %119 {offsets = [24, 0], sizes = [4, 64], strides = [1, 1]} : vector<32x64xbf16> to vector<4x64xbf16>
    %cst_71 = arith.constant dense<0.000000e+00> : vector<4x64xf32>
    %162 = tpu.matmul %161, %160, %cst_71 {dimension_numbers = #tpu.dot_dimension_numbers<[1], [1], [0], [0], [0, 0, 1, 0], [], []>} : vector<4x64xbf16>, vector<64x64xbf16>, vector<4x64xf32> -> vector<4x64xf32>
    %163 = vector.extract_strided_slice %120 {offsets = [0, 28], sizes = [64, 4], strides = [1, 1]} : vector<64x32xbf16> to vector<64x4xbf16>
    %164 = vector.extract_strided_slice %118 {offsets = [28, 0], sizes = [4, 64], strides = [1, 1]} : vector<32x64xbf16> to vector<4x64xbf16>
    %cst_72 = arith.constant dense<0.000000e+00> : vector<64x64xf32>
    %165 = tpu.matmul %163, %164, %cst_72 {dimension_numbers = #tpu.dot_dimension_numbers<[1], [0], [0], [1], [0, 0, 1, 1], [], []>} : vector<64x4xbf16>, vector<4x64xbf16>, vector<64x64xf32> -> vector<64x64xf32>
    %166 = arith.truncf %165 : vector<64x64xf32> to vector<64x64xbf16>
    %167 = vector.extract_strided_slice %119 {offsets = [28, 0], sizes = [4, 64], strides = [1, 1]} : vector<32x64xbf16> to vector<4x64xbf16>
    %cst_73 = arith.constant dense<0.000000e+00> : vector<4x64xf32>
    %168 = tpu.matmul %167, %166, %cst_73 {dimension_numbers = #tpu.dot_dimension_numbers<[1], [1], [0], [0], [0, 0, 1, 0], [], []>} : vector<4x64xbf16>, vector<64x64xbf16>, vector<4x64xf32> -> vector<4x64xf32>
    %169 = tpu.concatenate %126, %132, %138, %144, %150, %156, %162, %168 in 0 : vector<4x64xf32>, vector<4x64xf32>, vector<4x64xf32>, vector<4x64xf32>, vector<4x64xf32>, vector<4x64xf32>, vector<4x64xf32>, vector<4x64xf32> -> vector<32x64xf32>
    %170 = arith.addf %86, %169 : vector<32x64xf32>
    %cst_74 = arith.constant 5.000000e-01 : f32
    %171 = vector.broadcast %cst_74 : f32 to vector<32x64xf32>
    %172 = arith.mulf %170, %171 : vector<32x64xf32>
    %cst_75 = arith.constant 4.000000e+00 : f32
    %173 = vector.broadcast %cst_75 : f32 to vector<32x64xf32>
    %174 = arith.cmpf oge, %172, %173 : vector<32x64xf32>
    %cst_76 = arith.constant 1.000000e+00 : f32
    %cst_77 = arith.constant 0.000000e+00 : f32
    %175 = vector.broadcast %cst_76 : f32 to vector<32x64xf32>
    %176 = vector.broadcast %cst_77 : f32 to vector<32x64xf32>
    %177 = arith.select %174, %175, %176 : vector<32x64xi1>, vector<32x64xf32>
    %178 = arith.truncf %177 : vector<32x64xf32> to vector<32x64xbf16>
    %cst_78 = arith.constant dense<0.000000e+00> : vector<32x64xf32>
    %179 = tpu.matmul %2, %178, %cst_78 {dimension_numbers = #tpu.dot_dimension_numbers<[1], [0], [0], [1], [0, 0, 1, 1], [], []>} : vector<32x32xf32>, vector<32x64xbf16>, vector<32x64xf32> -> vector<32x64xf32>
    %180 = vector.broadcast %3 : vector<32x1xf32> to vector<32x64xf32>
    %181 = arith.addf %179, %180 : vector<32x64xf32>
    %182 = arith.addf %99, %181 : vector<32x64xf32>
    %cst_79 = arith.constant 5.000000e-01 : f32
    %183 = vector.broadcast %cst_79 : f32 to vector<32x64xf32>
    %184 = arith.mulf %182, %183 : vector<32x64xf32>
    %cst_80 = arith.constant 1.000000e+00 : f32
    %185 = vector.broadcast %cst_80 : f32 to vector<32x64xf32>
    %186 = arith.cmpf oge, %184, %185 : vector<32x64xf32>
    %cst_81 = arith.constant 1.000000e+00 : f32
    %cst_82 = arith.constant 0.000000e+00 : f32
    %187 = vector.broadcast %cst_81 : f32 to vector<32x64xf32>
    %188 = vector.broadcast %cst_82 : f32 to vector<32x64xf32>
    %189 = arith.select %186, %187, %188 : vector<32x64xi1>, vector<32x64xf32>
    %c1_83 = arith.constant 1 : index
    %c0_84 = arith.constant 0 : index
    %c0_85 = arith.constant 0 : index
    %c0_86 = arith.constant 0 : index
    %190 = vector.load %arg6[%c1_83, %c0_84, %c0_85, %c0_86] : memref<2x1x32x64xf32, #tpu.memory_space<vmem>>, vector<1x1x32x64xf32>
    %191 = vector.shape_cast %190 : vector<1x1x32x64xf32> to vector<32x64xf32>
    %192 = vector.shape_cast %189 : vector<32x64xf32> to vector<1x1x32x64xf32>
    tpu.vector_store %arg6[%c1_83, %c0_84, %c0_85, %c0_86], %192 {strides = array<i32>} : memref<2x1x32x64xf32, #tpu.memory_space<vmem>>, vector<1x1x32x64xf32>,
    return
  }
  func.func @transform_0(%arg0: i32) -> (i32, i32, i32, i32) {
    %c0_i32 = arith.constant 0 : i32
    %c0_i32_0 = arith.constant 0 : i32
    %c0_i32_1 = arith.constant 0 : i32
    %c0_i32_2 = arith.constant 0 : i32
    return %c0_i32, %arg0, %c0_i32_0, %c0_i32_1 : i32, i32, i32, i32
  }
  func.func @transform_1(%arg0: i32) -> (i32, i32) {
    %c0_i32 = arith.constant 0 : i32
    %c0_i32_0 = arith.constant 0 : i32
    %c0_i32_1 = arith.constant 0 : i32
    return %c0_i32, %c0_i32_0 : i32, i32
  }
  func.func @transform_2(%arg0: i32) -> (i32, i32) {
    %c0_i32 = arith.constant 0 : i32
    %c0_i32_0 = arith.constant 0 : i32
    %c0_i32_1 = arith.constant 0 : i32
    return %c0_i32, %c0_i32_0 : i32, i32
  }
  func.func @transform_3(%arg0: i32) -> (i32, i32) {
    %c0_i32 = arith.constant 0 : i32
    %c0_i32_0 = arith.constant 0 : i32
    %c0_i32_1 = arith.constant 0 : i32
    return %c0_i32, %c0_i32_0 : i32, i32
  }
  func.func @transform_4(%arg0: i32) -> (i32, i32) {
    %c0_i32 = arith.constant 0 : i32
    %c0_i32_0 = arith.constant 0 : i32
    %c0_i32_1 = arith.constant 0 : i32
    return %c0_i32, %c0_i32_0 : i32, i32
  }
  func.func @transform_5(%arg0: i32) -> (i32, i32, i32, i32) {
    %c0_i32 = arith.constant 0 : i32
    %c0_i32_0 = arith.constant 0 : i32
    %c0_i32_1 = arith.constant 0 : i32
    %c0_i32_2 = arith.constant 0 : i32
    return %c0_i32, %arg0, %c0_i32_0, %c0_i32_1 : i32, i32, i32, i32
  }
}

</mosaic_0001>

<llo_original>
// kernel: tpu_custom_call.1
$region0: #{tpu_custom_call.1}
  #allocation0 [shape = 'u32[]', space=smem, size = 0x4, offset = 0x4, fixed_abs, tag = 'smem constant byte address 0x4 - core index']
  #allocation1 [shape = 'u32[72,128]{1,0:T(1,128)}', space=vmem, size = 0x9000, scoped, tag = 'internal scratch']
  #allocation5 [shape = 's32[]', space=sflag, size = 0x4, offset = 0, fixed_abs, tag = 'sflag constant byte address 0x0 - dummy sync flag']
  %s0 = inlined_call_operand.vmem [shape: f32[2,2,32,64], index: 0, kind: input, shape index: {}]
  %s1 = inlined_call_operand.vmem [shape: f32[96,32], index: 1, kind: input, shape index: {}]
  %s2 = inlined_call_operand.vmem [shape: f32[96,1], index: 2, kind: input, shape index: {}]
  %s3 = inlined_call_operand.vmem [shape: f32[32,32], index: 3, kind: input, shape index: {}]
  %s4 = inlined_call_operand.vmem [shape: f32[32,1], index: 4, kind: input, shape index: {}]
  %s5 = inlined_call_operand.hbm [shape: f32[2,2,32,64], index: 5, kind: output, shape index: {}]
  %s6 = sld [smem:[#allocation0]]
  $region91: #{tpu_custom_call.1} parent=0
    _
  %s8 = ssub.s32 1, %s6
  %s9 = scalar_select 0, %s8, %s6
  $region1: #{tpu_custom_call.1} parent=0
    #allocation2 [shape = 'u8[65536]{0}', space=vmem, size = 0x10000, scoped, tag = 'input window, operand 0']
    #allocation3 [shape = 'u8[65536]{0}', space=vmem, size = 0x10000, scoped, tag = 'output window, operand 0']
    #allocation4 [shape = 's32[2]{0}', space=sflag, size = 0x8, scoped, tag = 'scoped memory for tpu_custom_call.1']
    %10 = vsyncpa [#allocation4], 0
    %s11 = scalar_lea.sflag [#allocation4], 1
    %12 = vsyncpa %s11, 0
    loop: start=0, step=1, limit=4
    $region2: #{tpu_custom_call.1} parent=1 // loop_pre_header
      _
    $region3: #{tpu_custom_call.1} parent=1 // loop_header
      %s14 = sphi 0, %s18
      %p15 = scmp.ge.s32.totalorder %s14, 4
      %s24 = sphi 0, %s26
      %s27 = sphi 0, %s24
      %s28 = sphi 0, %s27
      %s44 = sphi 0, %s28
      %s48 = sphi 0, %s48
      %s50 = sphi 0, %s48
      %s51 = sphi 0, %s50
      %s65 = sphi 0, %s51
      %s69 = sphi 0, %s69
      %s71 = sphi 0, %s69
      %s72 = sphi 0, %s71
      %s86 = sphi 0, %s72
      %s90 = sphi 0, %s90
      %s92 = sphi 0, %s90
      %s93 = sphi 0, %s92
      %s107 = sphi 0, %s93
      %s111 = sphi 0, %s111
      %s113 = sphi 0, %s111
      %s114 = sphi 0, %s113
      %s128 = sphi 0, %s114
      %s134 = sphi 0, %s136
      %s137 = sphi 0, %s134
      %s138 = sphi 0, %s137
      %s154 = sphi 0, %s138
    $region4: #{tpu_custom_call.1} parent=1 // loop_header_branch
      %17 = sbr.rel (%p15) target = $region8
    $region5: #{tpu_custom_call.1} parent=1 // loop_body
      %s19 = ssub.s32 %s14, 1
      %s20 = ssub.s32 %s14, 2
      %s21 = sadd.s32 %s14, 1
      %s22 = ssub.s32 %s14, %s21
      %p23 = scmp.eq.s32.totalorder %s22, 0
      %s25 = sadd.s32 %s24, 1
      %s26 = scalar_select %p23, %s24, %s25
      %p29 = pneg %p23
      %p30 = scmp.eq.s32.totalorder %s14, 1
      %p31 = por %p29, %p30
      %p32 = scmp.ne.s32.totalorder %s24, %s27
      %p33 = scmp.eq.s32.totalorder %s14, 0
      %p34 = por %p32, %p33
      %p35 = scmp.ne.s32.totalorder %s24, %s27
      %p36 = scmp.eq.s32.totalorder %s19, 1
      %p37 = por %p35, %p36
      %p38 = scmp.ne.s32.totalorder %s27, %s28
      %p39 = scmp.eq.s32.totalorder %s19, 0
      %p40 = por %p38, %p39
      %p41 = scmp.ne.s32.totalorder %s27, %s28
      %p42 = scmp.eq.s32.totalorder %s20, 1
      %p43 = por %p41, %p42
      %p45 = scmp.ne.s32.totalorder %s28, %s44
      %p46 = scmp.eq.s32.totalorder %s20, 0
      %p47 = por %p45, %p46
      %s49 = sadd.s32 %s48, 1
      %p52 = scmp.eq.s32.totalorder %s14, 1
      %p53 = scmp.ne.s32.totalorder %s48, %s50
      %p54 = scmp.eq.s32.totalorder %s14, 0
      %p55 = por %p53, %p54
      %p56 = scmp.ne.s32.totalorder %s48, %s50
      %p57 = scmp.eq.s32.totalorder %s19, 1
      %p58 = por %p56, %p57
      %p59 = scmp.ne.s32.totalorder %s50, %s51
      %p60 = scmp.eq.s32.totalorder %s19, 0
      %p61 = por %p59, %p60
      %p62 = scmp.ne.s32.totalorder %s50, %s51
      %p63 = scmp.eq.s32.totalorder %s20, 1
      %p64 = por %p62, %p63
      %p66 = scmp.ne.s32.totalorder %s51, %s65
      %p67 = scmp.eq.s32.totalorder %s20, 0
      %p68 = por %p66, %p67
      %s70 = sadd.s32 %s69, 1
      %p73 = scmp.eq.s32.totalorder %s14, 1
      %p74 = scmp.ne.s32.totalorder %s69, %s71
      %p75 = scmp.eq.s32.totalorder %s14, 0
      %p76 = por %p74, %p75
      %p77 = scmp.ne.s32.totalorder %s69, %s71
      %p78 = scmp.eq.s32.totalorder %s19, 1
      %p79 = por %p77, %p78
      %p80 = scmp.ne.s32.totalorder %s71, %s72
      %p81 = scmp.eq.s32.totalorder %s19, 0
      %p82 = por %p80, %p81
      %p83 = scmp.ne.s32.totalorder %s71, %s72
      %p84 = scmp.eq.s32.totalorder %s20, 1
      %p85 = por %p83, %p84
      %p87 = scmp.ne.s32.totalorder %s72, %s86
      %p88 = scmp.eq.s32.totalorder %s20, 0
      %p89 = por %p87, %p88
      %s91 = sadd.s32 %s90, 1
      %p94 = scmp.eq.s32.totalorder %s14, 1
      %p95 = scmp.ne.s32.totalorder %s90, %s92
      %p96 = scmp.eq.s32.totalorder %s14, 0
      %p97 = por %p95, %p96
      %p98 = scmp.ne.s32.totalorder %s90, %s92
      %p99 = scmp.eq.s32.totalorder %s19, 1
      %p100 = por %p98, %p99
      %p101 = scmp.ne.s32.totalorder %s92, %s93
      %p102 = scmp.eq.s32.totalorder %s19, 0
      %p103 = por %p101, %p102
      %p104 = scmp.ne.s32.totalorder %s92, %s93
      %p105 = scmp.eq.s32.totalorder %s20, 1
      %p106 = por %p104, %p105
      %p108 = scmp.ne.s32.totalorder %s93, %s107
      %p109 = scmp.eq.s32.totalorder %s20, 0
      %p110 = por %p108, %p109
      %s112 = sadd.s32 %s111, 1
      %p115 = scmp.eq.s32.totalorder %s14, 1
      %p116 = scmp.ne.s32.totalorder %s111, %s113
      %p117 = scmp.eq.s32.totalorder %s14, 0
      %p118 = por %p116, %p117
      %p119 = scmp.ne.s32.totalorder %s111, %s113
      %p120 = scmp.eq.s32.totalorder %s19, 1
      %p121 = por %p119, %p120
      %p122 = scmp.ne.s32.totalorder %s113, %s114
      %p123 = scmp.eq.s32.totalorder %s19, 0
      %p124 = por %p122, %p123
      %p125 = scmp.ne.s32.totalorder %s113, %s114
      %p126 = scmp.eq.s32.totalorder %s20, 1
      %p127 = por %p125, %p126
      %p129 = scmp.ne.s32.totalorder %s114, %s128
      %p130 = scmp.eq.s32.totalorder %s20, 0
      %p131 = por %p129, %p130
      %s132 = ssub.s32 %s14, %s21
      %p133 = scmp.eq.s32.totalorder %s132, 0
      %s135 = sadd.s32 %s134, 1
      %s136 = scalar_select %p133, %s134, %s135
      %p139 = pneg %p133
      %p140 = scmp.eq.s32.totalorder %s14, 1
      %p141 = por %p139, %p140
      %p142 = scmp.ne.s32.totalorder %s134, %s137
      %p143 = scmp.eq.s32.totalorder %s14, 0
      %p144 = por %p142, %p143
      %p145 = scmp.ne.s32.totalorder %s134, %s137
      %p146 = scmp.eq.s32.totalorder %s19, 1
      %p147 = por %p145, %p146
      %p148 = scmp.ne.s32.totalorder %s137, %s138
      %p149 = scmp.eq.s32.totalorder %s19, 0
      %p150 = por %p148, %p149
      %p151 = scmp.ne.s32.totalorder %s137, %s138
      %p152 = scmp.eq.s32.totalorder %s20, 1
      %p153 = por %p151, %p152
      %p155 = scmp.ne.s32.totalorder %s138, %s154
      %p156 = scmp.eq.s32.totalorder %s20, 0
      %p157 = por %p155, %p156
      %p158 = scmp.le.s32.totalorder 1, %s14
      %p159 = scmp.lt.s32.totalorder %s14, 3
      %p160 = pnand %p158, %p159
      %p161 = pneg %p160
      // Predicated region
      $region9: #{tpu_custom_call.1} parent=5 // pred_check
        _
      $region10: #{tpu_custom_call.1} parent=5 // pred_check_branch
        %163 = sbr.rel (%p160) target = $region12
      $region11: #{tpu_custom_call.1} parent=5 // pred_region
        %s164 = ssub.s32 %s14, 1
        // Predicated region
        $region13: #{tpu_custom_call.1} parent=11 // pred_check
          %p165 = pneg %p61
        $region14: #{tpu_custom_call.1} parent=11 // pred_check_branch
          %167 = sbr.rel (%p165) target = $region16
        $region15: #{tpu_custom_call.1} parent=11 // pred_region
          _
        $region16: #{tpu_custom_call.1} parent=11 // pred_fallthru
          _
        // Predicated region
        $region17: #{tpu_custom_call.1} parent=11 // pred_check
          %p168 = pneg %p82
        $region18: #{tpu_custom_call.1} parent=11 // pred_check_branch
          %170 = sbr.rel (%p168) target = $region20
        $region19: #{tpu_custom_call.1} parent=11 // pred_region
          _
        $region20: #{tpu_custom_call.1} parent=11 // pred_fallthru
          _
        // Predicated region
        $region21: #{tpu_custom_call.1} parent=11 // pred_check
          %p171 = pneg %p103
        $region22: #{tpu_custom_call.1} parent=11 // pred_check_branch
          %173 = sbr.rel (%p171) target = $region24
        $region23: #{tpu_custom_call.1} parent=11 // pred_region
          _
        $region24: #{tpu_custom_call.1} parent=11 // pred_fallthru
          _
        // Predicated region
        $region25: #{tpu_custom_call.1} parent=11 // pred_check
          %p174 = pneg %p124
        $region26: #{tpu_custom_call.1} parent=11 // pred_check_branch
          %176 = sbr.rel (%p174) target = $region28
        $region27: #{tpu_custom_call.1} parent=11 // pred_region
          _
        $region28: #{tpu_custom_call.1} parent=11 // pred_fallthru
          _
      $region12: #{tpu_custom_call.1} parent=5 // pred_fallthru
        _
      %p177 = scmp.lt.s32.totalorder %s14, 2
      // Predicated region
      $region29: #{tpu_custom_call.1} parent=5 // pred_check
        %p178 = pneg %p177
      $region30: #{tpu_custom_call.1} parent=5 // pred_check_branch
        %180 = sbr.rel (%p178) target = $region32
      $region31: #{tpu_custom_call.1} parent=5 // pred_region
        // Predicated region
        $region33: #{tpu_custom_call.1} parent=31 // pred_check
          %p181 = pneg %p34
        $region34: #{tpu_custom_call.1} parent=31 // pred_check_branch
          %183 = sbr.rel (%p181) target = $region36
        $region35: #{tpu_custom_call.1} parent=31 // pred_region
          %s184 = sand.u32 %s24, 1
          %s185 = sand.u32 %s24, 1
          %s186 = smul.addr %s185, 64
          %s187 = scalar_lea.vmem [#allocation2], %s186
          %s188 = smul.addr %s14, 4
          %s189 = smul.addr %s188, 8
          %s190 = scalar_lea.vmem %s0, %s189
          // Predicated region
          $region37: #{tpu_custom_call.1} parent=35 // pred_check
            _
          $region38: #{tpu_custom_call.1} parent=35 // pred_check_branch
            %192 = sbr.rel (0) target = $region40
          $region39: #{tpu_custom_call.1} parent=35 // pred_region
            // Predicated region
            $region41: #{tpu_custom_call.1} parent=39 // pred_check
              _
            $region42: #{tpu_custom_call.1} parent=39 // pred_check_branch
              %194 = sbr.rel (0) target = $region44
            $region43: #{tpu_custom_call.1} parent=39 // pred_region
              // Predicated region
              $region56: #{tpu_custom_call.1} parent=43 // pred_check
                _
              $region57: #{tpu_custom_call.1} parent=43 // pred_check_branch
                %224 = sbr.rel (0) target = $region59
              $region58: #{tpu_custom_call.1} parent=43 // pred_region
                loop: start=0, step=1, limit=1
                $region60: #{tpu_custom_call.1} parent=58 // loop_pre_header
                  _
                $region61: #{tpu_custom_call.1} parent=58 // loop_header
                  %s226 = sphi 0, %s230
                  %p227 = scmp.ge.s32.totalorder %s226, 1
                  %s231 = sphi %s190, %s190
                  %s232 = sphi %s187, %s187
                $region62: #{tpu_custom_call.1} parent=58 // loop_header_branch
                  %229 = sbr.rel (%p227) target = $region66
                $region63: #{tpu_custom_call.1} parent=58 // loop_body
                  %v233 = vld [vmem:[%s231] sm:$0xff]
                  %234 = vst [vmem:[%s232] sm:$0xff] %v233
                  %v235 = vld [vmem:[%s231 + $0x8] sm:$0xff]
                  %236 = vst [vmem:[%s232 + $0x8] sm:$0xff] %v235
                  %v237 = vld [vmem:[%s231 + $0x10] sm:$0xff]
                  %238 = vst [vmem:[%s232 + $0x10] sm:$0xff] %v237
                  %v239 = vld [vmem:[%s231 + $0x18] sm:$0xff]
                  %240 = vst [vmem:[%s232 + $0x18] sm:$0xff] %v239
                  %v241 = vld [vmem:[%s231 + $0x40] sm:$0xff]
                  %242 = vst [vmem:[%s232 + $0x20] sm:$0xff] %v241
                  %v243 = vld [vmem:[%s231 + $0x48] sm:$0xff]
                  %244 = vst [vmem:[%s232 + $0x28] sm:$0xff] %v243
                  %v245 = vld [vmem:[%s231 + $0x50] sm:$0xff]
                  %246 = vst [vmem:[%s232 + $0x30] sm:$0xff] %v245
                  %v247 = vld [vmem:[%s231 + $0x58] sm:$0xff]
                  %248 = vst [vmem:[%s232 + $0x38] sm:$0xff] %v247
                $region64: #{tpu_custom_call.1} parent=58 // loop_footer
                  %s230 = sadd.s32 1, %s226
                $region65: #{tpu_custom_call.1} parent=58 // loop_footer_branch
                  %225 = sbr.rel target = $region61
                $region66: #{tpu_custom_call.1} parent=58 // loop_exit
                  _
              $region59: #{tpu_custom_call.1} parent=43 // pred_fallthru
                _
              // Predicated region
              $region67: #{tpu_custom_call.1} parent=43 // pred_check
                _
              $region68: #{tpu_custom_call.1} parent=43 // pred_check_branch
                %250 = sbr.rel target = $region70
              $region69: #{tpu_custom_call.1} parent=43 // pred_region
                _
              $region70: #{tpu_custom_call.1} parent=43 // pred_fallthru
                _
            $region44: #{tpu_custom_call.1} parent=39 // pred_fallthru
              _
            // Predicated region
            $region45: #{tpu_custom_call.1} parent=39 // pred_check
              _
            $region46: #{tpu_custom_call.1} parent=39 // pred_check_branch
              %196 = sbr.rel target = $region48
            $region47: #{tpu_custom_call.1} parent=39 // pred_region
              %s198 = ssub.s32 256, 1
              loop: start=0, step=1, limit=1
              $region49: #{tpu_custom_call.1} parent=47 // loop_pre_header
                _
              $region50: #{tpu_custom_call.1} parent=47 // loop_header
                %s200 = sphi 0, %s204
                %p201 = scmp.ge.s32.totalorder %s200, 1
                %s205 = sphi %s190, %s190
                %s206 = sphi %s187, %s187
              $region51: #{tpu_custom_call.1} parent=47 // loop_header_branch
                %203 = sbr.rel (%p201) target = $region55
              $region52: #{tpu_custom_call.1} parent=47 // loop_body
                %v207 = vld [vmem:[%s205] sm:%s198]
                %208 = vst [vmem:[%s206] sm:%s198] %v207
                %v209 = vld [vmem:[%s205 + $0x8] sm:%s198]
                %210 = vst [vmem:[%s206 + $0x8] sm:%s198] %v209
                %v211 = vld [vmem:[%s205 + $0x10] sm:%s198]
                %212 = vst [vmem:[%s206 + $0x10] sm:%s198] %v211
                %v213 = vld [vmem:[%s205 + $0x18] sm:%s198]
                %214 = vst [vmem:[%s206 + $0x18] sm:%s198] %v213
                %v215 = vld [vmem:[%s205 + $0x40] sm:%s198]
                %216 = vst [vmem:[%s206 + $0x20] sm:%s198] %v215
                %v217 = vld [vmem:[%s205 + $0x48] sm:%s198]
                %218 = vst [vmem:[%s206 + $0x28] sm:%s198] %v217
                %v219 = vld [vmem:[%s205 + $0x50] sm:%s198]
                %220 = vst [vmem:[%s206 + $0x30] sm:%s198] %v219
                %v221 = vld [vmem:[%s205 + $0x58] sm:%s198]
                %222 = vst [vmem:[%s206 + $0x38] sm:%s198] %v221
              $region53: #{tpu_custom_call.1} parent=47 // loop_footer
                %s204 = sadd.s32 1, %s200
              $region54: #{tpu_custom_call.1} parent=47 // loop_footer_branch
                %199 = sbr.rel target = $region50
              $region55: #{tpu_custom_call.1} parent=47 // loop_exit
                _
            $region48: #{tpu_custom_call.1} parent=39 // pred_fallthru
              _
          $region40: #{tpu_custom_call.1} parent=35 // pred_fallthru
            _
          %251 = vnop
        $region36: #{tpu_custom_call.1} parent=31 // pred_fallthru
          _
      $region32: #{tpu_custom_call.1} parent=5 // pred_fallthru
        _
      %p252 = scmp.le.s32.totalorder 1, %s14
      %p253 = scmp.lt.s32.totalorder %s14, 3
      %p254 = pnand %p252, %p253
      %p255 = pneg %p254
      // Predicated region
      $region71: #{tpu_custom_call.1} parent=5 // pred_check
        _
      $region72: #{tpu_custom_call.1} parent=5 // pred_check_branch
        %257 = sbr.rel (%p254) target = $region74
      $region73: #{tpu_custom_call.1} parent=5 // pred_region
        %s258 = ssub.s32 %s14, 1
        %s259 = sand.u32 %s27, 1
        %s260 = sand.u32 %s27, 1
        %s261 = smul.addr %s260, 64
        %s262 = scalar_lea.vmem [#allocation2], %s261
        // Predicated region
        $region75: #{tpu_custom_call.1} parent=73 // pred_check
          %p263 = pneg %p40
        $region76: #{tpu_custom_call.1} parent=73 // pred_check_branch
          %265 = sbr.rel (%p263) target = $region78
        $region77: #{tpu_custom_call.1} parent=73 // pred_region
          _
        $region78: #{tpu_custom_call.1} parent=73 // pred_fallthru
          _
        %s266 = sand.u32 %s27, 1
        %s267 = sand.u32 %s27, 1
        %s268 = smul.addr %s267, 64
        %s269 = scalar_lea.vmem [#allocation2], %s268
        %p270 = pneg %p40
        %p271 = pneg %p37
        %p272 = pneg %p61
        %p273 = pneg %p58
        %p274 = pneg %p82
        %p275 = pneg %p79
        %p276 = pneg %p103
        %p277 = pneg %p100
        %p278 = pneg %p124
        %p279 = pneg %p121
        %p280 = pneg %p150
        %p281 = pneg %p147
        %s282 = sand.u32 %s137, 1
        %s283 = scalar_lea.sflag [#allocation4], %s282
        %s284 = sand.u32 %s137, 1
        %s285 = smul.addr %s284, 64
        %s286 = scalar_lea.vmem [#allocation3], %s285
        %v288 = vld [vmem:[%s1] sm:$0xff]
        %v289 = vld [vmem:[%s1 + $0x8] sm:$0xff]
        %v290 = vld [vmem:[%s1 + $0x10] sm:$0xff]
        %v291 = vld [vmem:[%s1 + $0x18] sm:$0xff]
        %v292 = vld [vmem:[%s1 + $0x20] sm:$0xff]
        %v293 = vld [vmem:[%s1 + $0x28] sm:$0xff]
        %v294 = vld [vmem:[%s1 + $0x30] sm:$0xff]
        %v295 = vld [vmem:[%s1 + $0x38] sm:$0xff]
        %v296 = vld [vmem:[%s1 + $0x40] sm:$0xff]
        %v297 = vld [vmem:[%s1 + $0x48] sm:$0xff]
        %v298 = vld [vmem:[%s1 + $0x50] sm:$0xff]
        %v299 = vld [vmem:[%s1 + $0x58] sm:$0xff]
        %v300 = vld [vmem:[%s2] sm:$0xff]
        %v301 = vld [vmem:[%s2 + $0x8] sm:$0xff]
        %v302 = vld [vmem:[%s2 + $0x10] sm:$0xff]
        %v303 = vld [vmem:[%s2 + $0x18] sm:$0xff]
        %v304 = vld [vmem:[%s2 + $0x20] sm:$0xff]
        %v305 = vld [vmem:[%s2 + $0x28] sm:$0xff]
        %v306 = vld [vmem:[%s2 + $0x30] sm:$0xff]
        %v307 = vld [vmem:[%s2 + $0x38] sm:$0xff]
        %v308 = vld [vmem:[%s2 + $0x40] sm:$0xff]
        %v309 = vld [vmem:[%s2 + $0x48] sm:$0xff]
        %v310 = vld [vmem:[%s2 + $0x50] sm:$0xff]
        %v311 = vld [vmem:[%s2 + $0x58] sm:$0xff]
        %v312 = vld [vmem:[%s3] sm:$0xff]
        %v313 = vld [vmem:[%s3 + $0x8] sm:$0xff]
        %v314 = vld [vmem:[%s3 + $0x10] sm:$0xff]
        %v315 = vld [vmem:[%s3 + $0x18] sm:$0xff]
        %v316 = vld [vmem:[%s4] sm:$0xff]
        %v317 = vld [vmem:[%s4 + $0x8] sm:$0xff]
        %v318 = vld [vmem:[%s4 + $0x10] sm:$0xff]
        %v319 = vld [vmem:[%s4 + $0x18] sm:$0xff]
        %v320 = vld [vmem:[%s262] sm:$0xff]
        %v321 = vld [vmem:[%s262 + $0x8] sm:$0xff]
        %v322 = vld [vmem:[%s262 + $0x10] sm:$0xff]
        %v323 = vld [vmem:[%s262 + $0x18] sm:$0xff]
        %325 = vset.pattern.permute.xlu0 0
        %326 = vperm.xlu0 %325, %v300
        %v327 = vpop.permute.xlu0 %326
        %330 = vset.pattern.permute.xlu0 0
        %331 = vperm.xlu0 %330, %v301
        %v332 = vpop.permute.xlu0 %331
        %335 = vset.pattern.permute.xlu0 0
        %336 = vperm.xlu0 %335, %v302
        %v337 = vpop.permute.xlu0 %336
        %340 = vset.pattern.permute.xlu0 0
        %341 = vperm.xlu0 %340, %v303
        %v342 = vpop.permute.xlu0 %341
        %345 = vset.pattern.permute.xlu0 0
        %346 = vperm.xlu0 %345, %v304
        %v347 = vpop.permute.xlu0 %346
        %350 = vset.pattern.permute.xlu0 0
        %351 = vperm.xlu0 %350, %v305
        %v352 = vpop.permute.xlu0 %351
        %355 = vset.pattern.permute.xlu0 0
        %356 = vperm.xlu0 %355, %v306
        %v357 = vpop.permute.xlu0 %356
        %360 = vset.pattern.permute.xlu0 0
        %361 = vperm.xlu0 %360, %v307
        %v362 = vpop.permute.xlu0 %361
        %365 = vset.pattern.permute.xlu0 0
        %366 = vperm.xlu0 %365, %v308
        %v367 = vpop.permute.xlu0 %366
        %370 = vset.pattern.permute.xlu0 0
        %371 = vperm.xlu0 %370, %v309
        %v372 = vpop.permute.xlu0 %371
        %375 = vset.pattern.permute.xlu0 0
        %376 = vperm.xlu0 %375, %v310
        %v377 = vpop.permute.xlu0 %376
        %380 = vset.pattern.permute.xlu0 0
        %381 = vperm.xlu0 %380, %v311
        %v382 = vpop.permute.xlu0 %381
        %vm384 = vcmask 261120
        %v386 = vsel %vm384, %v288, 0
        %v389 = vsel %vm384, %v289, 0
        %v392 = vsel %vm384, %v290, 0
        %v395 = vsel %vm384, %v291, 0
        %v398 = vsel %vm384, %v292, 0
        %v401 = vsel %vm384, %v293, 0
        %v404 = vsel %vm384, %v294, 0
        %v407 = vsel %vm384, %v295, 0
        %v410 = vsel %vm384, %v296, 0
        %v413 = vsel %vm384, %v297, 0
        %v416 = vsel %vm384, %v298, 0
        %v419 = vsel %vm384, %v299, 0
        %421 = vmatpush.msra.mxu0 0.0
        %422 = vmatpush.msra.mxu0 0.0
        %423 = vmatpush.msra.mxu0 0.0
        %424 = vmatpush.msra.mxu0 0.0
        %425 = vmatpush.msra.mxu0 0.0
        %426 = vmatpush.msra.mxu0 0.0
        %427 = vmatpush.msra.mxu0 0.0
        %428 = vmatpush.msra.mxu0 0.0
        %429 = vmatpush.msra.mxu0 0.0
        %430 = vmatpush.msra.mxu0 0.0
        %431 = vmatpush.msra.mxu0 0.0
        %432 = vmatpush.msra.mxu0 0.0
        %433 = vmatpush.msra.mxu0 %v323
        %434 = vmatpush.msra.mxu0 %v322
        %435 = vmatpush.msra.mxu0 %v321
        %436 = vmatpush.msra.mxu0 %v320
        %437 = vmatmul.f32.gmra.mxu0 %v386
        %v438 = vpop.f32.mrf.mxu0
        %v439 = vadd.f32 %v327, %v438
        %440 = vmatmul.f32.gmra.mxu0 %v389
        %v441 = vpop.f32.mrf.mxu0
        %v442 = vadd.f32 %v332, %v441
        %443 = vmatmul.f32.gmra.mxu0 %v392
        %v444 = vpop.f32.mrf.mxu0
        %v445 = vadd.f32 %v337, %v444
        %446 = vmatmul.f32.gmra.mxu0 %v395
        %v447 = vpop.f32.mrf.mxu0
        %v448 = vadd.f32 %v342, %v447
        %449 = vmatmul.f32.gmra.mxu0 %v398
        %v450 = vpop.f32.mrf.mxu0
        %v451 = vadd.f32 %v347, %v450
        %452 = vmatmul.f32.gmra.mxu0 %v401
        %v453 = vpop.f32.mrf.mxu0
        %v454 = vadd.f32 %v352, %v453
        %455 = vmatmul.f32.gmra.mxu0 %v404
        %v456 = vpop.f32.mrf.mxu0
        %v457 = vadd.f32 %v357, %v456
        %458 = vmatmul.f32.gmra.mxu0 %v407
        %v459 = vpop.f32.mrf.mxu0
        %v460 = vadd.f32 %v362, %v459
        %461 = vmatmul.f32.gmra.mxu0 %v410
        %v462 = vpop.f32.mrf.mxu0
        %v463 = vadd.f32 %v367, %v462
        %464 = vmatmul.f32.gmra.mxu0 %v413
        %v465 = vpop.f32.mrf.mxu0
        %v466 = vadd.f32 %v372, %v465
        %467 = vmatmul.f32.gmra.mxu0 %v416
        %v468 = vpop.f32.mrf.mxu0
        %v469 = vadd.f32 %v377, %v468
        %470 = vmatmul.f32.gmra.mxu0 %v419
        %v471 = vpop.f32.mrf.mxu0
        %v472 = vadd.f32 %v382, %v471
        %473 = vdwg.mxu0
        %v474 = vadd.f32 %v439, 0.0
        %v475 = vadd.f32 %v442, 0.0
        %v476 = vadd.f32 %v445, 0.0
        %v477 = vadd.f32 %v448, 0.0
        %v478 = vadd.f32 %v451, 0.0
        %v479 = vadd.f32 %v454, 0.0
        %v480 = vadd.f32 %v457, 0.0
        %v481 = vadd.f32 %v460, 0.0
        %v482 = vadd.f32 %v463, 0.0
        %v483 = vadd.f32 %v466, 0.0
        %v484 = vadd.f32 %v469, 0.0
        %v485 = vadd.f32 %v472, 0.0
        %v486 = vmul.f32 %v474, 0.5
        %v487 = vmul.f32 %v475, 0.5
        %v488 = vmul.f32 %v476, 0.5
        %v489 = vmul.f32 %v477, 0.5
        %v490 = vmul.f32 %v478, 0.5
        %v491 = vmul.f32 %v479, 0.5
        %v492 = vmul.f32 %v480, 0.5
        %v493 = vmul.f32 %v481, 0.5
        %v494 = vmul.f32 %v482, 0.5
        %v495 = vmul.f32 %v483, 0.5
        %v496 = vmul.f32 %v484, 0.5
        %v497 = vmul.f32 %v485, 0.5
        %vm498 = vcmp.ge.f32.partialorder %v486, 1.0
        %vm499 = vcmp.ge.f32.partialorder %v487, 1.0
        %vm500 = vcmp.ge.f32.partialorder %v488, 1.0
        %vm501 = vcmp.ge.f32.partialorder %v489, 1.0
        %vm502 = vcmp.ge.f32.partialorder %v490, 1.0
        %vm503 = vcmp.ge.f32.partialorder %v491, 1.0
        %vm504 = vcmp.ge.f32.partialorder %v492, 1.0
        %vm505 = vcmp.ge.f32.partialorder %v493, 1.0
        %vm506 = vcmp.ge.f32.partialorder %v494, 1.0
        %vm507 = vcmp.ge.f32.partialorder %v495, 1.0
        %vm508 = vcmp.ge.f32.partialorder %v496, 1.0
        %vm509 = vcmp.ge.f32.partialorder %v497, 1.0
        %v510 = vsel %vm498, 1.0, 0.0
        %v511 = vsel %vm499, 1.0, 0.0
        %v512 = vsel %vm500, 1.0, 0.0
        %v513 = vsel %vm501, 1.0, 0.0
        %v514 = vsel %vm502, 1.0, 0.0
        %v515 = vsel %vm503, 1.0, 0.0
        %v516 = vsel %vm504, 1.0, 0.0
        %v517 = vsel %vm505, 1.0, 0.0
        %v518 = vsel %vm506, 1.0, 0.0
        %v519 = vsel %vm507, 1.0, 0.0
        %v520 = vsel %vm508, 1.0, 0.0
        %v521 = vsel %vm509, 1.0, 0.0
        %v522 = vpack.c.bf16 %v510, %v510
        %v523 = vpack.c.bf16 %v511, %v511
        %v524 = vpack.c.bf16 %v512, %v512
        %v525 = vpack.c.bf16 %v513, %v513
        %v526 = vpack.c.bf16 %v514, %v514
        %v527 = vpack.c.bf16 %v515, %v515
        %v528 = vpack.c.bf16 %v516, %v516
        %v529 = vpack.c.bf16 %v517, %v517
        %v530 = vpack.c.bf16 %v518, %v518
        %v531 = vpack.c.bf16 %v519, %v519
        %v532 = vpack.c.bf16 %v520, %v520
        %v533 = vpack.c.bf16 %v521, %v521
        %v534 = vsel %vm498, 0.0, %v486
        %v535 = vsel %vm499, 0.0, %v487
        %v536 = vsel %vm500, 0.0, %v488
        %v537 = vsel %vm501, 0.0, %v489
        %v538 = vsel %vm502, 0.0, %v490
        %v539 = vsel %vm503, 0.0, %v491
        %v540 = vsel %vm504, 0.0, %v492
        %v541 = vsel %vm505, 0.0, %v493
        %v542 = vsel %vm506, 0.0, %v494
        %v543 = vsel %vm507, 0.0, %v495
        %v544 = vsel %vm508, 0.0, %v496
        %v545 = vsel %vm509, 0.0, %v497
        %v550 = vunpack.c.l.b16 %v522
        %v551 = vunpack.c.l.b16 %v523
        %v552 = vunpack.c.l.b16 %v524
        %v553 = vunpack.c.l.b16 %v525
        %v554 = vpack.c.b16 %v551, %v550
        %v555 = vpack.c.b16 %v553, %v552
        %558 = vxpose.xlu0.c.b16.start [1/8] %v554, 128
        %559 = vxpose.xlu0.c.b16.cont [2/8] %v555, 128
        %560 = vxpose.xlu0.c.b16.cont [3/8] 0, 128
        %561 = vxpose.xlu0.c.b16.cont [4/8] 0, 128
        %562 = vxpose.xlu0.c.b16.cont [5/8] 0, 128
        %563 = vxpose.xlu0.c.b16.cont [6/8] 0, 128
        %564 = vxpose.xlu0.c.b16.cont [7/8] 0, 128
        %565 = vxpose.xlu0.c.b16.end [8/8] 0, 128
        %v566 = vpop.trf.xlu0
        %v567 = vpop.trf.xlu0
        %v568 = vpop.trf.xlu0
        %v569 = vpop.trf.xlu0
        %v570 = vpop.trf.xlu0
        %v571 = vpop.trf.xlu0
        %v572 = vpop.trf.xlu0
        %v573 = vpop.trf.xlu0
        %vm574 = vcmask 31744
        %v576 = vsel %vm574, %v566, 0
        %v579 = vsel %vm574, %v567, 0
        %v582 = vsel %vm574, %v568, 0
        %v585 = vsel %vm574, %v569, 0
        %vm587 = vcmask 1041408
        %v589 = vsel %vm587, %v526, 0
        %591 = vmatpush.bf16.msra.mxu0 0
        %592 = vmatpush.bf16.msra.mxu0 0
        %593 = vmatpush.bf16.msra.mxu0 0
        %594 = vmatpush.bf16.msra.mxu0 0
        %595 = vmatpush.bf16.msra.mxu0 0
        %596 = vmatpush.bf16.msra.mxu0 0
        %597 = vmatpush.bf16.msra.mxu0 0
        %598 = vmatpush.bf16.msra.mxu0 %v589
        %599 = vmatmul.bf16.gmra.mxu0 %v576
        %v600 = vpop.f32.mrf.mxu0
        %v601 = vadd.f32 0.0, %v600
        %v602 = vpop.f32.mrf.mxu0
        %v603 = vadd.f32 0.0, %v602
        %604 = vmatmul.bf16.gmra.mxu0 %v579
        %v605 = vpop.f32.mrf.mxu0
        %v606 = vadd.f32 0.0, %v605
        %v607 = vpop.f32.mrf.mxu0
        %v608 = vadd.f32 0.0, %v607
        %609 = vmatmul.bf16.gmra.mxu0 %v582
        %v610 = vpop.f32.mrf.mxu0
        %v611 = vadd.f32 0.0, %v610
        %v612 = vpop.f32.mrf.mxu0
        %v613 = vadd.f32 0.0, %v612
        %614 = vmatmul.bf16.gmra.mxu0 %v585
        %v615 = vpop.f32.mrf.mxu0
        %v616 = vadd.f32 0.0, %v615
        %v617 = vpop.f32.mrf.mxu0
        %v618 = vadd.f32 0.0, %v617
        %619 = vdwg.mxu0
        %v620 = vpack.c.bf16 %v603, %v601
        %v621 = vpack.c.bf16 %v608, %v606
        %v622 = vpack.c.bf16 %v613, %v611
        %v623 = vpack.c.bf16 %v618, %v616
        %vm624 = vcmask 523264
        %v626 = vsel %vm624, %v530, 0
        %v629 = vsel %vm624, %v620, 0
        %v632 = vsel %vm624, %v621, 0
        %v635 = vsel %vm624, %v622, 0
        %v638 = vsel %vm624, %v623, 0
        %640 = vmatpush.bf16.xpose.msra.mxu0 0
        %641 = vmatpush.bf16.xpose.msra.mxu0 0
        %642 = vmatpush.bf16.xpose.msra.mxu0 0
        %643 = vmatpush.bf16.xpose.msra.mxu0 0
        %644 = vmatpush.bf16.xpose.msra.mxu0 %v638
        %645 = vmatpush.bf16.xpose.msra.mxu0 %v635
        %646 = vmatpush.bf16.xpose.msra.mxu0 %v632
        %647 = vmatpush.bf16.xpose.msra.mxu0 %v629
        %648 = vmatmul.bf16.gmra.mxu0 %v626
        %v649 = vpop.f32.mrf.mxu0
        %v650 = vadd.f32 0.0, %v649
        %v651 = vpop.f32.mrf.mxu0
        %652 = vdwg.mxu0
        %657 = vrot.lane.b32.xlu0 %v566, 124
        %v658 = vpop.permute.xlu0 %657
        %659 = vrot.lane.b32.xlu0 %v567, 124
        %v660 = vpop.permute.xlu0 %659
        %661 = vrot.lane.b32.xlu0 %v568, 124
        %v662 = vpop.permute.xlu0 %661
        %663 = vrot.lane.b32.xlu0 %v569, 124
        %v664 = vpop.permute.xlu0 %663
        %v666 = vunpack.c.l.b16 %v526
        %v667 = vpack.c.b16 %v666, %v666
        %v668 = vrot.slane %v667, 2
        %v670 = vsel %vm574, %v658, 0
        %v673 = vsel %vm574, %v660, 0
        %v676 = vsel %vm574, %v662, 0
        %v679 = vsel %vm574, %v664, 0
        %v682 = vsel %vm587, %v668, 0
        %684 = vmatpush.bf16.msra.mxu0 0
        %685 = vmatpush.bf16.msra.mxu0 0
        %686 = vmatpush.bf16.msra.mxu0 0
        %687 = vmatpush.bf16.msra.mxu0 0
        %688 = vmatpush.bf16.msra.mxu0 0
        %689 = vmatpush.bf16.msra.mxu0 0
        %690 = vmatpush.bf16.msra.mxu0 0
        %691 = vmatpush.bf16.msra.mxu0 %v682
        %692 = vmatmul.bf16.gmra.mxu0 %v670
        %v693 = vpop.f32.mrf.mxu0
        %v694 = vadd.f32 0.0, %v693
        %v695 = vpop.f32.mrf.mxu0
        %v696 = vadd.f32 0.0, %v695
        %697 = vmatmul.bf16.gmra.mxu0 %v673
        %v698 = vpop.f32.mrf.mxu0
        %v699 = vadd.f32 0.0, %v698
        %v700 = vpop.f32.mrf.mxu0
        %v701 = vadd.f32 0.0, %v700
        %702 = vmatmul.bf16.gmra.mxu0 %v676
        %v703 = vpop.f32.mrf.mxu0
        %v704 = vadd.f32 0.0, %v703
        %v705 = vpop.f32.mrf.mxu0
        %v706 = vadd.f32 0.0, %v705
        %707 = vmatmul.bf16.gmra.mxu0 %v679
        %v708 = vpop.f32.mrf.mxu0
        %v709 = vadd.f32 0.0, %v708
        %v710 = vpop.f32.mrf.mxu0
        %v711 = vadd.f32 0.0, %v710
        %712 = vdwg.mxu0
        %v713 = vpack.c.bf16 %v696, %v694
        %v714 = vpack.c.bf16 %v701, %v699
        %v715 = vpack.c.bf16 %v706, %v704
        %v716 = vpack.c.bf16 %v711, %v709
        %v718 = vunpack.c.l.b16 %v530
        %v719 = vpack.c.b16 %v718, %v718
        %v720 = vrot.slane %v719, 2
        %v722 = vsel %vm624, %v720, 0
        %v725 = vsel %vm624, %v713, 0
        %v728 = vsel %vm624, %v714, 0
        %v731 = vsel %vm624, %v715, 0
        %v734 = vsel %vm624, %v716, 0
        %736 = vmatpush.bf16.xpose.msra.mxu0 0
        %737 = vmatpush.bf16.xpose.msra.mxu0 0
        %738 = vmatpush.bf16.xpose.msra.mxu0 0
        %739 = vmatpush.bf16.xpose.msra.mxu0 0
        %740 = vmatpush.bf16.xpose.msra.mxu0 %v734
        %741 = vmatpush.bf16.xpose.msra.mxu0 %v731
        %742 = vmatpush.bf16.xpose.msra.mxu0 %v728
        %743 = vmatpush.bf16.xpose.msra.mxu0 %v725
        %744 = vmatmul.bf16.gmra.mxu0 %v722
        %v745 = vpop.f32.mrf.mxu0
        %v746 = vadd.f32 0.0, %v745
        %v747 = vpop.f32.mrf.mxu0
        %748 = vdwg.mxu0
        %749 = vrot.lane.b32.xlu0 %v566, 120
        %v750 = vpop.permute.xlu0 %749
        %751 = vrot.lane.b32.xlu0 %v567, 120
        %v752 = vpop.permute.xlu0 %751
        %753 = vrot.lane.b32.xlu0 %v568, 120
        %v754 = vpop.permute.xlu0 %753
        %755 = vrot.lane.b32.xlu0 %v569, 120
        %v756 = vpop.permute.xlu0 %755
        %v758 = vsel %vm574, %v750, 0
        %v761 = vsel %vm574, %v752, 0
        %v764 = vsel %vm574, %v754, 0
        %v767 = vsel %vm574, %v756, 0
        %v770 = vsel %vm587, %v527, 0
        %772 = vmatpush.bf16.msra.mxu0 0
        %773 = vmatpush.bf16.msra.mxu0 0
        %774 = vmatpush.bf16.msra.mxu0 0
        %775 = vmatpush.bf16.msra.mxu0 0
        %776 = vmatpush.bf16.msra.mxu0 0
        %777 = vmatpush.bf16.msra.mxu0 0
        %778 = vmatpush.bf16.msra.mxu0 0
        %779 = vmatpush.bf16.msra.mxu0 %v770
        %780 = vmatmul.bf16.gmra.mxu0 %v758
        %v781 = vpop.f32.mrf.mxu0
        %v782 = vadd.f32 0.0, %v781
        %v783 = vpop.f32.mrf.mxu0
        %v784 = vadd.f32 0.0, %v783
        %785 = vmatmul.bf16.gmra.mxu0 %v761
        %v786 = vpop.f32.mrf.mxu0
        %v787 = vadd.f32 0.0, %v786
        %v788 = vpop.f32.mrf.mxu0
        %v789 = vadd.f32 0.0, %v788
        %790 = vmatmul.bf16.gmra.mxu0 %v764
        %v791 = vpop.f32.mrf.mxu0
        %v792 = vadd.f32 0.0, %v791
        %v793 = vpop.f32.mrf.mxu0
        %v794 = vadd.f32 0.0, %v793
        %795 = vmatmul.bf16.gmra.mxu0 %v767
        %v796 = vpop.f32.mrf.mxu0
        %v797 = vadd.f32 0.0, %v796
        %v798 = vpop.f32.mrf.mxu0
        %v799 = vadd.f32 0.0, %v798
        %800 = vdwg.mxu0
        %v801 = vpack.c.bf16 %v784, %v782
        %v802 = vpack.c.bf16 %v789, %v787
        %v803 = vpack.c.bf16 %v794, %v792
        %v804 = vpack.c.bf16 %v799, %v797
        %v806 = vsel %vm624, %v531, 0
        %v809 = vsel %vm624, %v801, 0
        %v812 = vsel %vm624, %v802, 0
        %v815 = vsel %vm624, %v803, 0
        %v818 = vsel %vm624, %v804, 0
        %820 = vmatpush.bf16.xpose.msra.mxu0 0
        %821 = vmatpush.bf16.xpose.msra.mxu0 0
        %822 = vmatpush.bf16.xpose.msra.mxu0 0
        %823 = vmatpush.bf16.xpose.msra.mxu0 0
        %824 = vmatpush.bf16.xpose.msra.mxu0 %v818
        %825 = vmatpush.bf16.xpose.msra.mxu0 %v815
        %826 = vmatpush.bf16.xpose.msra.mxu0 %v812
        %827 = vmatpush.bf16.xpose.msra.mxu0 %v809
        %828 = vmatmul.bf16.gmra.mxu0 %v806
        %v829 = vpop.f32.mrf.mxu0
        %v830 = vadd.f32 0.0, %v829
        %v831 = vpop.f32.mrf.mxu0
        %832 = vdwg.mxu0
        %833 = vrot.lane.b32.xlu0 %v566, 116
        %v834 = vpop.permute.xlu0 %833
        %835 = vrot.lane.b32.xlu0 %v567, 116
        %v836 = vpop.permute.xlu0 %835
        %837 = vrot.lane.b32.xlu0 %v568, 116
        %v838 = vpop.permute.xlu0 %837
        %839 = vrot.lane.b32.xlu0 %v569, 116
        %v840 = vpop.permute.xlu0 %839
        %v842 = vunpack.c.l.b16 %v527
        %v843 = vpack.c.b16 %v842, %v842
        %v844 = vrot.slane %v843, 2
        %v846 = vsel %vm574, %v834, 0
        %v849 = vsel %vm574, %v836, 0
        %v852 = vsel %vm574, %v838, 0
        %v855 = vsel %vm574, %v840, 0
        %v858 = vsel %vm587, %v844, 0
        %860 = vmatpush.bf16.msra.mxu0 0
        %861 = vmatpush.bf16.msra.mxu0 0
        %862 = vmatpush.bf16.msra.mxu0 0
        %863 = vmatpush.bf16.msra.mxu0 0
        %864 = vmatpush.bf16.msra.mxu0 0
        %865 = vmatpush.bf16.msra.mxu0 0
        %866 = vmatpush.bf16.msra.mxu0 0
        %867 = vmatpush.bf16.msra.mxu0 %v858
        %868 = vmatmul.bf16.gmra.mxu0 %v846
        %v869 = vpop.f32.mrf.mxu0
        %v870 = vadd.f32 0.0, %v869
        %v871 = vpop.f32.mrf.mxu0
        %v872 = vadd.f32 0.0, %v871
        %873 = vmatmul.bf16.gmra.mxu0 %v849
        %v874 = vpop.f32.mrf.mxu0
        %v875 = vadd.f32 0.0, %v874
        %v876 = vpop.f32.mrf.mxu0
        %v877 = vadd.f32 0.0, %v876
        %878 = vmatmul.bf16.gmra.mxu0 %v852
        %v879 = vpop.f32.mrf.mxu0
        %v880 = vadd.f32 0.0, %v879
        %v881 = vpop.f32.mrf.mxu0
        %v882 = vadd.f32 0.0, %v881
        %883 = vmatmul.bf16.gmra.mxu0 %v855
        %v884 = vpop.f32.mrf.mxu0
        %v885 = vadd.f32 0.0, %v884
        %v886 = vpop.f32.mrf.mxu0
        %v887 = vadd.f32 0.0, %v886
        %888 = vdwg.mxu0
        %v889 = vpack.c.bf16 %v872, %v870
        %v890 = vpack.c.bf16 %v877, %v875
        %v891 = vpack.c.bf16 %v882, %v880
        %v892 = vpack.c.bf16 %v887, %v885
        %v894 = vunpack.c.l.b16 %v531
        %v895 = vpack.c.b16 %v894, %v894
        %v896 = vrot.slane %v895, 2
        %v898 = vsel %vm624, %v896, 0
        %v901 = vsel %vm624, %v889, 0
        %v904 = vsel %vm624, %v890, 0
        %v907 = vsel %vm624, %v891, 0
        %v910 = vsel %vm624, %v892, 0
        %912 = vmatpush.bf16.xpose.msra.mxu0 0
        %913 = vmatpush.bf16.xpose.msra.mxu0 0
        %914 = vmatpush.bf16.xpose.msra.mxu0 0
        %915 = vmatpush.bf16.xpose.msra.mxu0 0
        %916 = vmatpush.bf16.xpose.msra.mxu0 %v910
        %917 = vmatpush.bf16.xpose.msra.mxu0 %v907
        %918 = vmatpush.bf16.xpose.msra.mxu0 %v904
        %919 = vmatpush.bf16.xpose.msra.mxu0 %v901
        %920 = vmatmul.bf16.gmra.mxu0 %v898
        %v921 = vpop.f32.mrf.mxu0
        %v922 = vadd.f32 0.0, %v921
        %v923 = vpop.f32.mrf.mxu0
        %924 = vdwg.mxu0
        %925 = vrot.lane.b32.xlu0 %v566, 112
        %v926 = vpop.permute.xlu0 %925
        %927 = vrot.lane.b32.xlu0 %v567, 112
        %v928 = vpop.permute.xlu0 %927
        %929 = vrot.lane.b32.xlu0 %v568, 112
        %v930 = vpop.permute.xlu0 %929
        %931 = vrot.lane.b32.xlu0 %v569, 112
        %v932 = vpop.permute.xlu0 %931
        %v934 = vsel %vm574, %v926, 0
        %v937 = vsel %vm574, %v928, 0
        %v940 = vsel %vm574, %v930, 0
        %v943 = vsel %vm574, %v932, 0
        %v946 = vsel %vm587, %v528, 0
        %948 = vmatpush.bf16.msra.mxu0 0
        %949 = vmatpush.bf16.msra.mxu0 0
        %950 = vmatpush.bf16.msra.mxu0 0
        %951 = vmatpush.bf16.msra.mxu0 0
        %952 = vmatpush.bf16.msra.mxu0 0
        %953 = vmatpush.bf16.msra.mxu0 0
        %954 = vmatpush.bf16.msra.mxu0 0
        %955 = vmatpush.bf16.msra.mxu0 %v946
        %956 = vmatmul.bf16.gmra.mxu0 %v934
        %v957 = vpop.f32.mrf.mxu0
        %v958 = vadd.f32 0.0, %v957
        %v959 = vpop.f32.mrf.mxu0
        %v960 = vadd.f32 0.0, %v959
        %961 = vmatmul.bf16.gmra.mxu0 %v937
        %v962 = vpop.f32.mrf.mxu0
        %v963 = vadd.f32 0.0, %v962
        %v964 = vpop.f32.mrf.mxu0
        %v965 = vadd.f32 0.0, %v964
        %966 = vmatmul.bf16.gmra.mxu0 %v940
        %v967 = vpop.f32.mrf.mxu0
        %v968 = vadd.f32 0.0, %v967
        %v969 = vpop.f32.mrf.mxu0
        %v970 = vadd.f32 0.0, %v969
        %971 = vmatmul.bf16.gmra.mxu0 %v943
        %v972 = vpop.f32.mrf.mxu0
        %v973 = vadd.f32 0.0, %v972
        %v974 = vpop.f32.mrf.mxu0
        %v975 = vadd.f32 0.0, %v974
        %976 = vdwg.mxu0
        %v977 = vpack.c.bf16 %v960, %v958
        %v978 = vpack.c.bf16 %v965, %v963
        %v979 = vpack.c.bf16 %v970, %v968
        %v980 = vpack.c.bf16 %v975, %v973
        %v982 = vsel %vm624, %v532, 0
        %v985 = vsel %vm624, %v977, 0
        %v988 = vsel %vm624, %v978, 0
        %v991 = vsel %vm624, %v979, 0
        %v994 = vsel %vm624, %v980, 0
        %996 = vmatpush.bf16.xpose.msra.mxu0 0
        %997 = vmatpush.bf16.xpose.msra.mxu0 0
        %998 = vmatpush.bf16.xpose.msra.mxu0 0
        %999 = vmatpush.bf16.xpose.msra.mxu0 0
        %1000 = vmatpush.bf16.xpose.msra.mxu0 %v994
        %1001 = vmatpush.bf16.xpose.msra.mxu0 %v991
        %1002 = vmatpush.bf16.xpose.msra.mxu0 %v988
        %1003 = vmatpush.bf16.xpose.msra.mxu0 %v985
        %1004 = vmatmul.bf16.gmra.mxu0 %v982
        %v1005 = vpop.f32.mrf.mxu0
        %v1006 = vadd.f32 0.0, %v1005
        %v1007 = vpop.f32.mrf.mxu0
        %1008 = vdwg.mxu0
        %1009 = vrot.lane.b32.xlu0 %v566, 108
        %v1010 = vpop.permute.xlu0 %1009
        %1011 = vrot.lane.b32.xlu0 %v567, 108
        %v1012 = vpop.permute.xlu0 %1011
        %1013 = vrot.lane.b32.xlu0 %v568, 108
        %v1014 = vpop.permute.xlu0 %1013
        %1015 = vrot.lane.b32.xlu0 %v569, 108
        %v1016 = vpop.permute.xlu0 %1015
        %v1018 = vunpack.c.l.b16 %v528
        %v1019 = vpack.c.b16 %v1018, %v1018
        %v1020 = vrot.slane %v1019, 2
        %v1022 = vsel %vm574, %v1010, 0
        %v1025 = vsel %vm574, %v1012, 0
        %v1028 = vsel %vm574, %v1014, 0
        %v1031 = vsel %vm574, %v1016, 0
        %v1034 = vsel %vm587, %v1020, 0
        %1036 = vmatpush.bf16.msra.mxu0 0
        %1037 = vmatpush.bf16.msra.mxu0 0
        %1038 = vmatpush.bf16.msra.mxu0 0
        %1039 = vmatpush.bf16.msra.mxu0 0
        %1040 = vmatpush.bf16.msra.mxu0 0
        %1041 = vmatpush.bf16.msra.mxu0 0
        %1042 = vmatpush.bf16.msra.mxu0 0
        %1043 = vmatpush.bf16.msra.mxu0 %v1034
        %1044 = vmatmul.bf16.gmra.mxu0 %v1022
        %v1045 = vpop.f32.mrf.mxu0
        %v1046 = vadd.f32 0.0, %v1045
        %v1047 = vpop.f32.mrf.mxu0
        %v1048 = vadd.f32 0.0, %v1047
        %1049 = vmatmul.bf16.gmra.mxu0 %v1025
        %v1050 = vpop.f32.mrf.mxu0
        %v1051 = vadd.f32 0.0, %v1050
        %v1052 = vpop.f32.mrf.mxu0
        %v1053 = vadd.f32 0.0, %v1052
        %1054 = vmatmul.bf16.gmra.mxu0 %v1028
        %v1055 = vpop.f32.mrf.mxu0
        %v1056 = vadd.f32 0.0, %v1055
        %v1057 = vpop.f32.mrf.mxu0
        %v1058 = vadd.f32 0.0, %v1057
        %1059 = vmatmul.bf16.gmra.mxu0 %v1031
        %v1060 = vpop.f32.mrf.mxu0
        %v1061 = vadd.f32 0.0, %v1060
        %v1062 = vpop.f32.mrf.mxu0
        %v1063 = vadd.f32 0.0, %v1062
        %1064 = vdwg.mxu0
        %v1065 = vpack.c.bf16 %v1048, %v1046
        %v1066 = vpack.c.bf16 %v1053, %v1051
        %v1067 = vpack.c.bf16 %v1058, %v1056
        %v1068 = vpack.c.bf16 %v1063, %v1061
        %v1070 = vunpack.c.l.b16 %v532
        %v1071 = vpack.c.b16 %v1070, %v1070
        %v1072 = vrot.slane %v1071, 2
        %v1074 = vsel %vm624, %v1072, 0
        %v1077 = vsel %vm624, %v1065, 0
        %v1080 = vsel %vm624, %v1066, 0
        %v1083 = vsel %vm624, %v1067, 0
        %v1086 = vsel %vm624, %v1068, 0
        %1088 = vmatpush.bf16.xpose.msra.mxu0 0
        %1089 = vmatpush.bf16.xpose.msra.mxu0 0
        %1090 = vmatpush.bf16.xpose.msra.mxu0 0
        %1091 = vmatpush.bf16.xpose.msra.mxu0 0
        %1092 = vmatpush.bf16.xpose.msra.mxu0 %v1086
        %1093 = vmatpush.bf16.xpose.msra.mxu0 %v1083
        %1094 = vmatpush.bf16.xpose.msra.mxu0 %v1080
        %1095 = vmatpush.bf16.xpose.msra.mxu0 %v1077
        %1096 = vmatmul.bf16.gmra.mxu0 %v1074
        %v1097 = vpop.f32.mrf.mxu0
        %v1098 = vadd.f32 0.0, %v1097
        %v1099 = vpop.f32.mrf.mxu0
        %1100 = vdwg.mxu0
        %1101 = vrot.lane.b32.xlu0 %v566, 104
        %v1102 = vpop.permute.xlu0 %1101
        %1103 = vrot.lane.b32.xlu0 %v567, 104
        %v1104 = vpop.permute.xlu0 %1103
        %1105 = vrot.lane.b32.xlu0 %v568, 104
        %v1106 = vpop.permute.xlu0 %1105
        %1107 = vrot.lane.b32.xlu0 %v569, 104
        %v1108 = vpop.permute.xlu0 %1107
        %v1110 = vsel %vm574, %v1102, 0
        %v1113 = vsel %vm574, %v1104, 0
        %v1116 = vsel %vm574, %v1106, 0
        %v1119 = vsel %vm574, %v1108, 0
        %v1122 = vsel %vm587, %v529, 0
        %1124 = vmatpush.bf16.msra.mxu0 0
        %1125 = vmatpush.bf16.msra.mxu0 0
        %1126 = vmatpush.bf16.msra.mxu0 0
        %1127 = vmatpush.bf16.msra.mxu0 0
        %1128 = vmatpush.bf16.msra.mxu0 0
        %1129 = vmatpush.bf16.msra.mxu0 0
        %1130 = vmatpush.bf16.msra.mxu0 0
        %1131 = vmatpush.bf16.msra.mxu0 %v1122
        %1132 = vmatmul.bf16.gmra.mxu0 %v1110
        %v1133 = vpop.f32.mrf.mxu0
        %v1134 = vadd.f32 0.0, %v1133
        %v1135 = vpop.f32.mrf.mxu0
        %v1136 = vadd.f32 0.0, %v1135
        %1137 = vmatmul.bf16.gmra.mxu0 %v1113
        %v1138 = vpop.f32.mrf.mxu0
        %v1139 = vadd.f32 0.0, %v1138
        %v1140 = vpop.f32.mrf.mxu0
        %v1141 = vadd.f32 0.0, %v1140
        %1142 = vmatmul.bf16.gmra.mxu0 %v1116
        %v1143 = vpop.f32.mrf.mxu0
        %v1144 = vadd.f32 0.0, %v1143
        %v1145 = vpop.f32.mrf.mxu0
        %v1146 = vadd.f32 0.0, %v1145
        %1147 = vmatmul.bf16.gmra.mxu0 %v1119
        %v1148 = vpop.f32.mrf.mxu0
        %v1149 = vadd.f32 0.0, %v1148
        %v1150 = vpop.f32.mrf.mxu0
        %v1151 = vadd.f32 0.0, %v1150
        %1152 = vdwg.mxu0
        %v1153 = vpack.c.bf16 %v1136, %v1134
        %v1154 = vpack.c.bf16 %v1141, %v1139
        %v1155 = vpack.c.bf16 %v1146, %v1144
        %v1156 = vpack.c.bf16 %v1151, %v1149
        %v1158 = vsel %vm624, %v533, 0
        %v1161 = vsel %vm624, %v1153, 0
        %v1164 = vsel %vm624, %v1154, 0
        %v1167 = vsel %vm624, %v1155, 0
        %v1170 = vsel %vm624, %v1156, 0
        %1172 = vmatpush.bf16.xpose.msra.mxu0 0
        %1173 = vmatpush.bf16.xpose.msra.mxu0 0
        %1174 = vmatpush.bf16.xpose.msra.mxu0 0
        %1175 = vmatpush.bf16.xpose.msra.mxu0 0
        %1176 = vmatpush.bf16.xpose.msra.mxu0 %v1170
        %1177 = vmatpush.bf16.xpose.msra.mxu0 %v1167
        %1178 = vmatpush.bf16.xpose.msra.mxu0 %v1164
        %1179 = vmatpush.bf16.xpose.msra.mxu0 %v1161
        %1180 = vmatmul.bf16.gmra.mxu0 %v1158
        %v1181 = vpop.f32.mrf.mxu0
        %v1182 = vadd.f32 0.0, %v1181
        %v1183 = vpop.f32.mrf.mxu0
        %1184 = vdwg.mxu0
        %1185 = vrot.lane.b32.xlu0 %v566, 100
        %v1186 = vpop.permute.xlu0 %1185
        %1187 = vrot.lane.b32.xlu0 %v567, 100
        %v1188 = vpop.permute.xlu0 %1187
        %1189 = vrot.lane.b32.xlu0 %v568, 100
        %v1190 = vpop.permute.xlu0 %1189
        %1191 = vrot.lane.b32.xlu0 %v569, 100
        %v1192 = vpop.permute.xlu0 %1191
        %v1194 = vunpack.c.l.b16 %v529
        %v1195 = vpack.c.b16 %v1194, %v1194
        %v1196 = vrot.slane %v1195, 2
        %v1198 = vsel %vm574, %v1186, 0
        %v1201 = vsel %vm574, %v1188, 0
        %v1204 = vsel %vm574, %v1190, 0
        %v1207 = vsel %vm574, %v1192, 0
        %v1210 = vsel %vm587, %v1196, 0
        %1212 = vmatpush.bf16.msra.mxu0 0
        %1213 = vmatpush.bf16.msra.mxu0 0
        %1214 = vmatpush.bf16.msra.mxu0 0
        %1215 = vmatpush.bf16.msra.mxu0 0
        %1216 = vmatpush.bf16.msra.mxu0 0
        %1217 = vmatpush.bf16.msra.mxu0 0
        %1218 = vmatpush.bf16.msra.mxu0 0
        %1219 = vmatpush.bf16.msra.mxu0 %v1210
        %1220 = vmatmul.bf16.gmra.mxu0 %v1198
        %v1221 = vpop.f32.mrf.mxu0
        %v1222 = vadd.f32 0.0, %v1221
        %v1223 = vpop.f32.mrf.mxu0
        %v1224 = vadd.f32 0.0, %v1223
        %1225 = vmatmul.bf16.gmra.mxu0 %v1201
        %v1226 = vpop.f32.mrf.mxu0
        %v1227 = vadd.f32 0.0, %v1226
        %v1228 = vpop.f32.mrf.mxu0
        %v1229 = vadd.f32 0.0, %v1228
        %1230 = vmatmul.bf16.gmra.mxu0 %v1204
        %v1231 = vpop.f32.mrf.mxu0
        %v1232 = vadd.f32 0.0, %v1231
        %v1233 = vpop.f32.mrf.mxu0
        %v1234 = vadd.f32 0.0, %v1233
        %1235 = vmatmul.bf16.gmra.mxu0 %v1207
        %v1236 = vpop.f32.mrf.mxu0
        %v1237 = vadd.f32 0.0, %v1236
        %v1238 = vpop.f32.mrf.mxu0
        %v1239 = vadd.f32 0.0, %v1238
        %1240 = vdwg.mxu0
        %v1241 = vpack.c.bf16 %v1224, %v1222
        %v1242 = vpack.c.bf16 %v1229, %v1227
        %v1243 = vpack.c.bf16 %v1234, %v1232
        %v1244 = vpack.c.bf16 %v1239, %v1237
        %v1246 = vunpack.c.l.b16 %v533
        %v1247 = vpack.c.b16 %v1246, %v1246
        %v1248 = vrot.slane %v1247, 2
        %v1250 = vsel %vm624, %v1248, 0
        %v1253 = vsel %vm624, %v1241, 0
        %v1256 = vsel %vm624, %v1242, 0
        %v1259 = vsel %vm624, %v1243, 0
        %v1262 = vsel %vm624, %v1244, 0
        %1264 = vmatpush.bf16.xpose.msra.mxu0 0
        %1265 = vmatpush.bf16.xpose.msra.mxu0 0
        %1266 = vmatpush.bf16.xpose.msra.mxu0 0
        %1267 = vmatpush.bf16.xpose.msra.mxu0 0
        %1268 = vmatpush.bf16.xpose.msra.mxu0 %v1262
        %1269 = vmatpush.bf16.xpose.msra.mxu0 %v1259
        %1270 = vmatpush.bf16.xpose.msra.mxu0 %v1256
        %1271 = vmatpush.bf16.xpose.msra.mxu0 %v1253
        %1272 = vmatmul.bf16.gmra.mxu0 %v1250
        %v1273 = vpop.f32.mrf.mxu0
        %v1274 = vadd.f32 0.0, %v1273
        %v1275 = vpop.f32.mrf.mxu0
        %1276 = vdwg.mxu0
        %v1278 = vrot.slane %v746, 4
        %v1281 = vrot.slane %v922, 4
        %v1284 = vrot.slane %v1098, 4
        %v1287 = vrot.slane %v1274, 4
        %vm1289 = vcmask 1043456
        %v1290 = vsel %vm1289, %v650, %v1278
        %v1291 = vsel %vm1289, %v830, %v1281
        %v1292 = vsel %vm1289, %v1006, %v1284
        %v1293 = vsel %vm1289, %v1182, %v1287
        %v1294 = vadd.f32 %v1290, 0.0
        %v1295 = vadd.f32 %v1291, 0.0
        %v1296 = vadd.f32 %v1292, 0.0
        %v1297 = vadd.f32 %v1293, 0.0
        %v1298 = vmul.f32 %v1294, 0.5
        %v1299 = vmul.f32 %v1295, 0.5
        %v1300 = vmul.f32 %v1296, 0.5
        %v1301 = vmul.f32 %v1297, 0.5
        %vm1302 = vcmp.ge.f32.partialorder %v1298, 4.0
        %vm1303 = vcmp.ge.f32.partialorder %v1299, 4.0
        %vm1304 = vcmp.ge.f32.partialorder %v1300, 4.0
        %vm1305 = vcmp.ge.f32.partialorder %v1301, 4.0
        %v1306 = vsel %vm1302, 1.0, 0.0
        %v1307 = vsel %vm1303, 1.0, 0.0
        %v1308 = vsel %vm1304, 1.0, 0.0
        %v1309 = vsel %vm1305, 1.0, 0.0
        %v1310 = vpack.c.bf16 %v1307, %v1306
        %v1311 = vpack.c.bf16 %v1309, %v1308
        %v1312 = vsel %vm1302, 0.0, %v1298
        %v1313 = vsel %vm1303, 0.0, %v1299
        %v1314 = vsel %vm1304, 0.0, %v1300
        %v1315 = vsel %vm1305, 0.0, %v1301
        %1317 = vset.pattern.permute.xlu0 0
        %1318 = vperm.xlu0 %1317, %v316
        %v1319 = vpop.permute.xlu0 %1318
        %1322 = vset.pattern.permute.xlu0 0
        %1323 = vperm.xlu0 %1322, %v317
        %v1324 = vpop.permute.xlu0 %1323
        %1327 = vset.pattern.permute.xlu0 0
        %1328 = vperm.xlu0 %1327, %v318
        %v1329 = vpop.permute.xlu0 %1328
        %1332 = vset.pattern.permute.xlu0 0
        %1333 = vperm.xlu0 %1332, %v319
        %v1334 = vpop.permute.xlu0 %1333
        %v1337 = vsel %vm384, %v312, 0
        %v1340 = vsel %vm384, %v313, 0
        %v1343 = vsel %vm384, %v314, 0
        %v1346 = vsel %vm384, %v315, 0
        %1348 = vmatpush.bf16.msra.mxu0 0
        %1349 = vmatpush.bf16.msra.mxu0 0
        %1350 = vmatpush.bf16.msra.mxu0 0
        %1351 = vmatpush.bf16.msra.mxu0 0
        %1352 = vmatpush.bf16.msra.mxu0 0
        %1353 = vmatpush.bf16.msra.mxu0 0
        %1354 = vmatpush.bf16.msra.mxu0 %v1311
        %1355 = vmatpush.bf16.msra.mxu0 %v1310
        %1356 = vmatmul.f32.gmra.mxu0 %v1337
        %v1357 = vpop.f32.mrf.mxu0
        %v1358 = vadd.f32 %v1319, %v1357
        %1359 = vmatmul.f32.gmra.mxu0 %v1340
        %v1360 = vpop.f32.mrf.mxu0
        %v1361 = vadd.f32 %v1324, %v1360
        %1362 = vmatmul.f32.gmra.mxu0 %v1343
        %v1363 = vpop.f32.mrf.mxu0
        %v1364 = vadd.f32 %v1329, %v1363
        %1365 = vmatmul.f32.gmra.mxu0 %v1346
        %v1366 = vpop.f32.mrf.mxu0
        %v1367 = vadd.f32 %v1334, %v1366
        %1368 = vdwg.mxu0
        %v1369 = vadd.f32 %v1358, 0.0
        %v1370 = vadd.f32 %v1361, 0.0
        %v1371 = vadd.f32 %v1364, 0.0
        %v1372 = vadd.f32 %v1367, 0.0
        %v1373 = vmul.f32 %v1369, 0.5
        %v1374 = vmul.f32 %v1370, 0.5
        %v1375 = vmul.f32 %v1371, 0.5
        %v1376 = vmul.f32 %v1372, 0.5
        %vm1377 = vcmp.ge.f32.partialorder %v1373, 1.0
        %vm1378 = vcmp.ge.f32.partialorder %v1374, 1.0
        %vm1379 = vcmp.ge.f32.partialorder %v1375, 1.0
        %vm1380 = vcmp.ge.f32.partialorder %v1376, 1.0
        %v1381 = vsel %vm1377, 1.0, 0.0
        %v1382 = vsel %vm1378, 1.0, 0.0
        %v1383 = vsel %vm1379, 1.0, 0.0
        %v1384 = vsel %vm1380, 1.0, 0.0
        %v1385 = vsel %vm1377, 0.0, %v1373
        %v1386 = vsel %vm1378, 0.0, %v1374
        %v1387 = vsel %vm1379, 0.0, %v1375
        %v1388 = vsel %vm1380, 0.0, %v1376
        %1389 = vst.msk [vmem:[%s286] sm:$0xff] %vm624, %v1381
        %1390 = vst.msk [vmem:[%s286 + $0x8] sm:$0xff] %vm624, %v1382
        %1391 = vst.msk [vmem:[%s286 + $0x10] sm:$0xff] %vm624, %v1383
        %1392 = vst.msk [vmem:[%s286 + $0x18] sm:$0xff] %vm624, %v1384
        %s1393 = scalar_lea.vmem %s262, 32 [#allocation2]
        %v1394 = vld [vmem:[%s1393] sm:$0xff]
        %v1395 = vld [vmem:[%s1393 + $0x8] sm:$0xff]
        %v1396 = vld [vmem:[%s1393 + $0x10] sm:$0xff]
        %v1397 = vld [vmem:[%s1393 + $0x18] sm:$0xff]
        %1398 = vmatpush.msra.mxu0 0.0
        %1399 = vmatpush.msra.mxu0 0.0
        %1400 = vmatpush.msra.mxu0 0.0
        %1401 = vmatpush.msra.mxu0 0.0
        %1402 = vmatpush.msra.mxu0 0.0
        %1403 = vmatpush.msra.mxu0 0.0
        %1404 = vmatpush.msra.mxu0 0.0
        %1405 = vmatpush.msra.mxu0 0.0
        %1406 = vmatpush.msra.mxu0 0.0
        %1407 = vmatpush.msra.mxu0 0.0
        %1408 = vmatpush.msra.mxu0 0.0
        %1409 = vmatpush.msra.mxu0 0.0
        %1410 = vmatpush.msra.mxu0 %v1397
        %1411 = vmatpush.msra.mxu0 %v1396
        %1412 = vmatpush.msra.mxu0 %v1395
        %1413 = vmatpush.msra.mxu0 %v1394
        %1414 = vmatmul.f32.gmra.mxu0 %v386
        %v1415 = vpop.f32.mrf.mxu0
        %v1416 = vadd.f32 %v327, %v1415
        %1417 = vmatmul.f32.gmra.mxu0 %v389
        %v1418 = vpop.f32.mrf.mxu0
        %v1419 = vadd.f32 %v332, %v1418
        %1420 = vmatmul.f32.gmra.mxu0 %v392
        %v1421 = vpop.f32.mrf.mxu0
        %v1422 = vadd.f32 %v337, %v1421
        %1423 = vmatmul.f32.gmra.mxu0 %v395
        %v1424 = vpop.f32.mrf.mxu0
        %v1425 = vadd.f32 %v342, %v1424
        %1426 = vmatmul.f32.gmra.mxu0 %v398
        %v1427 = vpop.f32.mrf.mxu0
        %v1428 = vadd.f32 %v347, %v1427
        %1429 = vmatmul.f32.gmra.mxu0 %v401
        %v1430 = vpop.f32.mrf.mxu0
        %v1431 = vadd.f32 %v352, %v1430
        %1432 = vmatmul.f32.gmra.mxu0 %v404
        %v1433 = vpop.f32.mrf.mxu0
        %v1434 = vadd.f32 %v357, %v1433
        %1435 = vmatmul.f32.gmra.mxu0 %v407
        %v1436 = vpop.f32.mrf.mxu0
        %v1437 = vadd.f32 %v362, %v1436
        %1438 = vmatmul.f32.gmra.mxu0 %v410
        %v1439 = vpop.f32.mrf.mxu0
        %v1440 = vadd.f32 %v367, %v1439
        %1441 = vmatmul.f32.gmra.mxu0 %v413
        %v1442 = vpop.f32.mrf.mxu0
        %v1443 = vadd.f32 %v372, %v1442
        %1444 = vmatmul.f32.gmra.mxu0 %v416
        %v1445 = vpop.f32.mrf.mxu0
        %v1446 = vadd.f32 %v377, %v1445
        %1447 = vmatmul.f32.gmra.mxu0 %v419
        %v1448 = vpop.f32.mrf.mxu0
        %v1449 = vadd.f32 %v382, %v1448
        %1450 = vdwg.mxu0
        %v1451 = vadd.f32 %v534, %v1416
        %v1452 = vadd.f32 %v535, %v1419
        %v1453 = vadd.f32 %v536, %v1422
        %v1454 = vadd.f32 %v537, %v1425
        %v1455 = vadd.f32 %v538, %v1428
        %v1456 = vadd.f32 %v539, %v1431
        %v1457 = vadd.f32 %v540, %v1434
        %v1458 = vadd.f32 %v541, %v1437
        %v1459 = vadd.f32 %v542, %v1440
        %v1460 = vadd.f32 %v543, %v1443
        %v1461 = vadd.f32 %v544, %v1446
        %v1462 = vadd.f32 %v545, %v1449
        %v1463 = vmul.f32 %v1451, 0.5
        %v1464 = vmul.f32 %v1452, 0.5
        %v1465 = vmul.f32 %v1453, 0.5
        %v1466 = vmul.f32 %v1454, 0.5
        %v1467 = vmul.f32 %v1455, 0.5
        %v1468 = vmul.f32 %v1456, 0.5
        %v1469 = vmul.f32 %v1457, 0.5
        %v1470 = vmul.f32 %v1458, 0.5
        %v1471 = vmul.f32 %v1459, 0.5
        %v1472 = vmul.f32 %v1460, 0.5
        %v1473 = vmul.f32 %v1461, 0.5
        %v1474 = vmul.f32 %v1462, 0.5
        %vm1475 = vcmp.ge.f32.partialorder %v1463, 1.0
        %vm1476 = vcmp.ge.f32.partialorder %v1464, 1.0
        %vm1477 = vcmp.ge.f32.partialorder %v1465, 1.0
        %vm1478 = vcmp.ge.f32.partialorder %v1466, 1.0
        %vm1479 = vcmp.ge.f32.partialorder %v1467, 1.0
        %vm1480 = vcmp.ge.f32.partialorder %v1468, 1.0
        %vm1481 = vcmp.ge.f32.partialorder %v1469, 1.0
        %vm1482 = vcmp.ge.f32.partialorder %v1470, 1.0
        %vm1483 = vcmp.ge.f32.partialorder %v1471, 1.0
        %vm1484 = vcmp.ge.f32.partialorder %v1472, 1.0
        %vm1485 = vcmp.ge.f32.partialorder %v1473, 1.0
        %vm1486 = vcmp.ge.f32.partialorder %v1474, 1.0
        %v1487 = vsel %vm1475, 1.0, 0.0
        %v1488 = vsel %vm1476, 1.0, 0.0
        %v1489 = vsel %vm1477, 1.0, 0.0
        %v1490 = vsel %vm1478, 1.0, 0.0
        %v1491 = vsel %vm1479, 1.0, 0.0
        %v1492 = vsel %vm1480, 1.0, 0.0
        %v1493 = vsel %vm1481, 1.0, 0.0
        %v1494 = vsel %vm1482, 1.0, 0.0
        %v1495 = vsel %vm1483, 1.0, 0.0
        %v1496 = vsel %vm1484, 1.0, 0.0
        %v1497 = vsel %vm1485, 1.0, 0.0
        %v1498 = vsel %vm1486, 1.0, 0.0
        %v1499 = vpack.c.bf16 %v1487, %v1487
        %v1500 = vpack.c.bf16 %v1488, %v1488
        %v1501 = vpack.c.bf16 %v1489, %v1489
        %v1502 = vpack.c.bf16 %v1490, %v1490
        %v1503 = vpack.c.bf16 %v1491, %v1491
        %v1504 = vpack.c.bf16 %v1492, %v1492
        %v1505 = vpack.c.bf16 %v1493, %v1493
        %v1506 = vpack.c.bf16 %v1494, %v1494
        %v1507 = vpack.c.bf16 %v1495, %v1495
        %v1508 = vpack.c.bf16 %v1496, %v1496
        %v1509 = vpack.c.bf16 %v1497, %v1497
        %v1510 = vpack.c.bf16 %v1498, %v1498
        %v1515 = vunpack.c.l.b16 %v1499
        %v1516 = vunpack.c.l.b16 %v1500
        %v1517 = vunpack.c.l.b16 %v1501
        %v1518 = vunpack.c.l.b16 %v1502
        %v1519 = vpack.c.b16 %v1516, %v1515
        %v1520 = vpack.c.b16 %v1518, %v1517
        %1523 = vxpose.xlu0.c.b16.start [1/8] %v1519, 128
        %1524 = vxpose.xlu0.c.b16.cont [2/8] %v1520, 128
        %1525 = vxpose.xlu0.c.b16.cont [3/8] 0, 128
        %1526 = vxpose.xlu0.c.b16.cont [4/8] 0, 128
        %1527 = vxpose.xlu0.c.b16.cont [5/8] 0, 128
        %1528 = vxpose.xlu0.c.b16.cont [6/8] 0, 128
        %1529 = vxpose.xlu0.c.b16.cont [7/8] 0, 128
        %1530 = vxpose.xlu0.c.b16.end [8/8] 0, 128
        %v1531 = vpop.trf.xlu0
        %v1532 = vpop.trf.xlu0
        %v1533 = vpop.trf.xlu0
        %v1534 = vpop.trf.xlu0
        %v1535 = vpop.trf.xlu0
        %v1536 = vpop.trf.xlu0
        %v1537 = vpop.trf.xlu0
        %v1538 = vpop.trf.xlu0
        %v1540 = vsel %vm574, %v1531, 0
        %v1543 = vsel %vm574, %v1532, 0
        %v1546 = vsel %vm574, %v1533, 0
        %v1549 = vsel %vm574, %v1534, 0
        %v1552 = vsel %vm587, %v1503, 0
        %1554 = vmatpush.bf16.msra.mxu0 0
        %1555 = vmatpush.bf16.msra.mxu0 0
        %1556 = vmatpush.bf16.msra.mxu0 0
        %1557 = vmatpush.bf16.msra.mxu0 0
        %1558 = vmatpush.bf16.msra.mxu0 0
        %1559 = vmatpush.bf16.msra.mxu0 0
        %1560 = vmatpush.bf16.msra.mxu0 0
        %1561 = vmatpush.bf16.msra.mxu0 %v1552
        %1562 = vmatmul.bf16.gmra.mxu0 %v1540
        %v1563 = vpop.f32.mrf.mxu0
        %v1564 = vadd.f32 0.0, %v1563
        %v1565 = vpop.f32.mrf.mxu0
        %v1566 = vadd.f32 0.0, %v1565
        %1567 = vmatmul.bf16.gmra.mxu0 %v1543
        %v1568 = vpop.f32.mrf.mxu0
        %v1569 = vadd.f32 0.0, %v1568
        %v1570 = vpop.f32.mrf.mxu0
        %v1571 = vadd.f32 0.0, %v1570
        %1572 = vmatmul.bf16.gmra.mxu0 %v1546
        %v1573 = vpop.f32.mrf.mxu0
        %v1574 = vadd.f32 0.0, %v1573
        %v1575 = vpop.f32.mrf.mxu0
        %v1576 = vadd.f32 0.0, %v1575
        %1577 = vmatmul.bf16.gmra.mxu0 %v1549
        %v1578 = vpop.f32.mrf.mxu0
        %v1579 = vadd.f32 0.0, %v1578
        %v1580 = vpop.f32.mrf.mxu0
        %v1581 = vadd.f32 0.0, %v1580
        %1582 = vdwg.mxu0
        %v1583 = vpack.c.bf16 %v1566, %v1564
        %v1584 = vpack.c.bf16 %v1571, %v1569
        %v1585 = vpack.c.bf16 %v1576, %v1574
        %v1586 = vpack.c.bf16 %v1581, %v1579
        %v1588 = vsel %vm624, %v1507, 0
        %v1591 = vsel %vm624, %v1583, 0
        %v1594 = vsel %vm624, %v1584, 0
        %v1597 = vsel %vm624, %v1585, 0
        %v1600 = vsel %vm624, %v1586, 0
        %1602 = vmatpush.bf16.xpose.msra.mxu0 0
        %1603 = vmatpush.bf16.xpose.msra.mxu0 0
        %1604 = vmatpush.bf16.xpose.msra.mxu0 0
        %1605 = vmatpush.bf16.xpose.msra.mxu0 0
        %1606 = vmatpush.bf16.xpose.msra.mxu0 %v1600
        %1607 = vmatpush.bf16.xpose.msra.mxu0 %v1597
        %1608 = vmatpush.bf16.xpose.msra.mxu0 %v1594
        %1609 = vmatpush.bf16.xpose.msra.mxu0 %v1591
        %1610 = vmatmul.bf16.gmra.mxu0 %v1588
        %v1611 = vpop.f32.mrf.mxu0
        %v1612 = vadd.f32 0.0, %v1611
        %v1613 = vpop.f32.mrf.mxu0
        %1614 = vdwg.mxu0
        %1619 = vrot.lane.b32.xlu0 %v1531, 124
        %v1620 = vpop.permute.xlu0 %1619
        %1621 = vrot.lane.b32.xlu0 %v1532, 124
        %v1622 = vpop.permute.xlu0 %1621
        %1623 = vrot.lane.b32.xlu0 %v1533, 124
        %v1624 = vpop.permute.xlu0 %1623
        %1625 = vrot.lane.b32.xlu0 %v1534, 124
        %v1626 = vpop.permute.xlu0 %1625
        %v1628 = vunpack.c.l.b16 %v1503
        %v1629 = vpack.c.b16 %v1628, %v1628
        %v1630 = vrot.slane %v1629, 2
        %v1632 = vsel %vm574, %v1620, 0
        %v1635 = vsel %vm574, %v1622, 0
        %v1638 = vsel %vm574, %v1624, 0
        %v1641 = vsel %vm574, %v1626, 0
        %v1644 = vsel %vm587, %v1630, 0
        %1646 = vmatpush.bf16.msra.mxu0 0
        %1647 = vmatpush.bf16.msra.mxu0 0
        %1648 = vmatpush.bf16.msra.mxu0 0
        %1649 = vmatpush.bf16.msra.mxu0 0
        %1650 = vmatpush.bf16.msra.mxu0 0
        %1651 = vmatpush.bf16.msra.mxu0 0
        %1652 = vmatpush.bf16.msra.mxu0 0
        %1653 = vmatpush.bf16.msra.mxu0 %v1644
        %1654 = vmatmul.bf16.gmra.mxu0 %v1632
        %v1655 = vpop.f32.mrf.mxu0
        %v1656 = vadd.f32 0.0, %v1655
        %v1657 = vpop.f32.mrf.mxu0
        %v1658 = vadd.f32 0.0, %v1657
        %1659 = vmatmul.bf16.gmra.mxu0 %v1635
        %v1660 = vpop.f32.mrf.mxu0
        %v1661 = vadd.f32 0.0, %v1660
        %v1662 = vpop.f32.mrf.mxu0
        %v1663 = vadd.f32 0.0, %v1662
        %1664 = vmatmul.bf16.gmra.mxu0 %v1638
        %v1665 = vpop.f32.mrf.mxu0
        %v1666 = vadd.f32 0.0, %v1665
        %v1667 = vpop.f32.mrf.mxu0
        %v1668 = vadd.f32 0.0, %v1667
        %1669 = vmatmul.bf16.gmra.mxu0 %v1641
        %v1670 = vpop.f32.mrf.mxu0
        %v1671 = vadd.f32 0.0, %v1670
        %v1672 = vpop.f32.mrf.mxu0
        %v1673 = vadd.f32 0.0, %v1672
        %1674 = vdwg.mxu0
        %v1675 = vpack.c.bf16 %v1658, %v1656
        %v1676 = vpack.c.bf16 %v1663, %v1661
        %v1677 = vpack.c.bf16 %v1668, %v1666
        %v1678 = vpack.c.bf16 %v1673, %v1671
        %v1680 = vunpack.c.l.b16 %v1507
        %v1681 = vpack.c.b16 %v1680, %v1680
        %v1682 = vrot.slane %v1681, 2
        %v1684 = vsel %vm624, %v1682, 0
        %v1687 = vsel %vm624, %v1675, 0
        %v1690 = vsel %vm624, %v1676, 0
        %v1693 = vsel %vm624, %v1677, 0
        %v1696 = vsel %vm624, %v1678, 0
        %1698 = vmatpush.bf16.xpose.msra.mxu0 0
        %1699 = vmatpush.bf16.xpose.msra.mxu0 0
        %1700 = vmatpush.bf16.xpose.msra.mxu0 0
        %1701 = vmatpush.bf16.xpose.msra.mxu0 0
        %1702 = vmatpush.bf16.xpose.msra.mxu0 %v1696
        %1703 = vmatpush.bf16.xpose.msra.mxu0 %v1693
        %1704 = vmatpush.bf16.xpose.msra.mxu0 %v1690
        %1705 = vmatpush.bf16.xpose.msra.mxu0 %v1687
        %1706 = vmatmul.bf16.gmra.mxu0 %v1684
        %v1707 = vpop.f32.mrf.mxu0
        %v1708 = vadd.f32 0.0, %v1707
        %v1709 = vpop.f32.mrf.mxu0
        %1710 = vdwg.mxu0
        %1711 = vrot.lane.b32.xlu0 %v1531, 120
        %v1712 = vpop.permute.xlu0 %1711
        %1713 = vrot.lane.b32.xlu0 %v1532, 120
        %v1714 = vpop.permute.xlu0 %1713
        %1715 = vrot.lane.b32.xlu0 %v1533, 120
        %v1716 = vpop.permute.xlu0 %1715
        %1717 = vrot.lane.b32.xlu0 %v1534, 120
        %v1718 = vpop.permute.xlu0 %1717
        %v1720 = vsel %vm574, %v1712, 0
        %v1723 = vsel %vm574, %v1714, 0
        %v1726 = vsel %vm574, %v1716, 0
        %v1729 = vsel %vm574, %v1718, 0
        %v1732 = vsel %vm587, %v1504, 0
        %1734 = vmatpush.bf16.msra.mxu0 0
        %1735 = vmatpush.bf16.msra.mxu0 0
        %1736 = vmatpush.bf16.msra.mxu0 0
        %1737 = vmatpush.bf16.msra.mxu0 0
        %1738 = vmatpush.bf16.msra.mxu0 0
        %1739 = vmatpush.bf16.msra.mxu0 0
        %1740 = vmatpush.bf16.msra.mxu0 0
        %1741 = vmatpush.bf16.msra.mxu0 %v1732
        %1742 = vmatmul.bf16.gmra.mxu0 %v1720
        %v1743 = vpop.f32.mrf.mxu0
        %v1744 = vadd.f32 0.0, %v1743
        %v1745 = vpop.f32.mrf.mxu0
        %v1746 = vadd.f32 0.0, %v1745
        %1747 = vmatmul.bf16.gmra.mxu0 %v1723
        %v1748 = vpop.f32.mrf.mxu0
        %v1749 = vadd.f32 0.0, %v1748
        %v1750 = vpop.f32.mrf.mxu0
        %v1751 = vadd.f32 0.0, %v1750
        %1752 = vmatmul.bf16.gmra.mxu0 %v1726
        %v1753 = vpop.f32.mrf.mxu0
        %v1754 = vadd.f32 0.0, %v1753
        %v1755 = vpop.f32.mrf.mxu0
        %v1756 = vadd.f32 0.0, %v1755
        %1757 = vmatmul.bf16.gmra.mxu0 %v1729
        %v1758 = vpop.f32.mrf.mxu0
        %v1759 = vadd.f32 0.0, %v1758
        %v1760 = vpop.f32.mrf.mxu0
        %v1761 = vadd.f32 0.0, %v1760
        %1762 = vdwg.mxu0
        %v1763 = vpack.c.bf16 %v1746, %v1744
        %v1764 = vpack.c.bf16 %v1751, %v1749
        %v1765 = vpack.c.bf16 %v1756, %v1754
        %v1766 = vpack.c.bf16 %v1761, %v1759
        %v1768 = vsel %vm624, %v1508, 0
        %v1771 = vsel %vm624, %v1763, 0
        %v1774 = vsel %vm624, %v1764, 0
        %v1777 = vsel %vm624, %v1765, 0
        %v1780 = vsel %vm624, %v1766, 0
        %1782 = vmatpush.bf16.xpose.msra.mxu0 0
        %1783 = vmatpush.bf16.xpose.msra.mxu0 0
        %1784 = vmatpush.bf16.xpose.msra.mxu0 0
        %1785 = vmatpush.bf16.xpose.msra.mxu0 0
        %1786 = vmatpush.bf16.xpose.msra.mxu0 %v1780
        %1787 = vmatpush.bf16.xpose.msra.mxu0 %v1777
        %1788 = vmatpush.bf16.xpose.msra.mxu0 %v1774
        %1789 = vmatpush.bf16.xpose.msra.mxu0 %v1771
        %1790 = vmatmul.bf16.gmra.mxu0 %v1768
        %v1791 = vpop.f32.mrf.mxu0
        %v1792 = vadd.f32 0.0, %v1791
        %v1793 = vpop.f32.mrf.mxu0
        %1794 = vdwg.mxu0
        %1795 = vrot.lane.b32.xlu0 %v1531, 116
        %v1796 = vpop.permute.xlu0 %1795
        %1797 = vrot.lane.b32.xlu0 %v1532, 116
        %v1798 = vpop.permute.xlu0 %1797
        %1799 = vrot.lane.b32.xlu0 %v1533, 116
        %v1800 = vpop.permute.xlu0 %1799
        %1801 = vrot.lane.b32.xlu0 %v1534, 116
        %v1802 = vpop.permute.xlu0 %1801
        %v1804 = vunpack.c.l.b16 %v1504
        %v1805 = vpack.c.b16 %v1804, %v1804
        %v1806 = vrot.slane %v1805, 2
        %v1808 = vsel %vm574, %v1796, 0
        %v1811 = vsel %vm574, %v1798, 0
        %v1814 = vsel %vm574, %v1800, 0
        %v1817 = vsel %vm574, %v1802, 0
        %v1820 = vsel %vm587, %v1806, 0
        %1822 = vmatpush.bf16.msra.mxu0 0
        %1823 = vmatpush.bf16.msra.mxu0 0
        %1824 = vmatpush.bf16.msra.mxu0 0
        %1825 = vmatpush.bf16.msra.mxu0 0
        %1826 = vmatpush.bf16.msra.mxu0 0
        %1827 = vmatpush.bf16.msra.mxu0 0
        %1828 = vmatpush.bf16.msra.mxu0 0
        %1829 = vmatpush.bf16.msra.mxu0 %v1820
        %1830 = vmatmul.bf16.gmra.mxu0 %v1808
        %v1831 = vpop.f32.mrf.mxu0
        %v1832 = vadd.f32 0.0, %v1831
        %v1833 = vpop.f32.mrf.mxu0
        %v1834 = vadd.f32 0.0, %v1833
        %1835 = vmatmul.bf16.gmra.mxu0 %v1811
        %v1836 = vpop.f32.mrf.mxu0
        %v1837 = vadd.f32 0.0, %v1836
        %v1838 = vpop.f32.mrf.mxu0
        %v1839 = vadd.f32 0.0, %v1838
        %1840 = vmatmul.bf16.gmra.mxu0 %v1814
        %v1841 = vpop.f32.mrf.mxu0
        %v1842 = vadd.f32 0.0, %v1841
        %v1843 = vpop.f32.mrf.mxu0
        %v1844 = vadd.f32 0.0, %v1843
        %1845 = vmatmul.bf16.gmra.mxu0 %v1817
        %v1846 = vpop.f32.mrf.mxu0
        %v1847 = vadd.f32 0.0, %v1846
        %v1848 = vpop.f32.mrf.mxu0
        %v1849 = vadd.f32 0.0, %v1848
        %1850 = vdwg.mxu0
        %v1851 = vpack.c.bf16 %v1834, %v1832
        %v1852 = vpack.c.bf16 %v1839, %v1837
        %v1853 = vpack.c.bf16 %v1844, %v1842
        %v1854 = vpack.c.bf16 %v1849, %v1847
        %v1856 = vunpack.c.l.b16 %v1508
        %v1857 = vpack.c.b16 %v1856, %v1856
        %v1858 = vrot.slane %v1857, 2
        %v1860 = vsel %vm624, %v1858, 0
        %v1863 = vsel %vm624, %v1851, 0
        %v1866 = vsel %vm624, %v1852, 0
        %v1869 = vsel %vm624, %v1853, 0
        %v1872 = vsel %vm624, %v1854, 0
        %1874 = vmatpush.bf16.xpose.msra.mxu0 0
        %1875 = vmatpush.bf16.xpose.msra.mxu0 0
        %1876 = vmatpush.bf16.xpose.msra.mxu0 0
        %1877 = vmatpush.bf16.xpose.msra.mxu0 0
        %1878 = vmatpush.bf16.xpose.msra.mxu0 %v1872
        %1879 = vmatpush.bf16.xpose.msra.mxu0 %v1869
        %1880 = vmatpush.bf16.xpose.msra.mxu0 %v1866
        %1881 = vmatpush.bf16.xpose.msra.mxu0 %v1863
        %1882 = vmatmul.bf16.gmra.mxu0 %v1860
        %v1883 = vpop.f32.mrf.mxu0
        %v1884 = vadd.f32 0.0, %v1883
        %v1885 = vpop.f32.mrf.mxu0
        %1886 = vdwg.mxu0
        %1887 = vrot.lane.b32.xlu0 %v1531, 112
        %v1888 = vpop.permute.xlu0 %1887
        %1889 = vrot.lane.b32.xlu0 %v1532, 112
        %v1890 = vpop.permute.xlu0 %1889
        %1891 = vrot.lane.b32.xlu0 %v1533, 112
        %v1892 = vpop.permute.xlu0 %1891
        %1893 = vrot.lane.b32.xlu0 %v1534, 112
        %v1894 = vpop.permute.xlu0 %1893
        %v1896 = vsel %vm574, %v1888, 0
        %v1899 = vsel %vm574, %v1890, 0
        %v1902 = vsel %vm574, %v1892, 0
        %v1905 = vsel %vm574, %v1894, 0
        %v1908 = vsel %vm587, %v1505, 0
        %1910 = vmatpush.bf16.msra.mxu0 0
        %1911 = vmatpush.bf16.msra.mxu0 0
        %1912 = vmatpush.bf16.msra.mxu0 0
        %1913 = vmatpush.bf16.msra.mxu0 0
        %1914 = vmatpush.bf16.msra.mxu0 0
        %1915 = vmatpush.bf16.msra.mxu0 0
        %1916 = vmatpush.bf16.msra.mxu0 0
        %1917 = vmatpush.bf16.msra.mxu0 %v1908
        %1918 = vmatmul.bf16.gmra.mxu0 %v1896
        %v1919 = vpop.f32.mrf.mxu0
        %v1920 = vadd.f32 0.0, %v1919
        %v1921 = vpop.f32.mrf.mxu0
        %v1922 = vadd.f32 0.0, %v1921
        %1923 = vmatmul.bf16.gmra.mxu0 %v1899
        %v1924 = vpop.f32.mrf.mxu0
        %v1925 = vadd.f32 0.0, %v1924
        %v1926 = vpop.f32.mrf.mxu0
        %v1927 = vadd.f32 0.0, %v1926
        %1928 = vmatmul.bf16.gmra.mxu0 %v1902
        %v1929 = vpop.f32.mrf.mxu0
        %v1930 = vadd.f32 0.0, %v1929
        %v1931 = vpop.f32.mrf.mxu0
        %v1932 = vadd.f32 0.0, %v1931
        %1933 = vmatmul.bf16.gmra.mxu0 %v1905
        %v1934 = vpop.f32.mrf.mxu0
        %v1935 = vadd.f32 0.0, %v1934
        %v1936 = vpop.f32.mrf.mxu0
        %v1937 = vadd.f32 0.0, %v1936
        %1938 = vdwg.mxu0
        %v1939 = vpack.c.bf16 %v1922, %v1920
        %v1940 = vpack.c.bf16 %v1927, %v1925
        %v1941 = vpack.c.bf16 %v1932, %v1930
        %v1942 = vpack.c.bf16 %v1937, %v1935
        %v1944 = vsel %vm624, %v1509, 0
        %v1947 = vsel %vm624, %v1939, 0
        %v1950 = vsel %vm624, %v1940, 0
        %v1953 = vsel %vm624, %v1941, 0
        %v1956 = vsel %vm624, %v1942, 0
        %1958 = vmatpush.bf16.xpose.msra.mxu0 0
        %1959 = vmatpush.bf16.xpose.msra.mxu0 0
        %1960 = vmatpush.bf16.xpose.msra.mxu0 0
        %1961 = vmatpush.bf16.xpose.msra.mxu0 0
        %1962 = vmatpush.bf16.xpose.msra.mxu0 %v1956
        %1963 = vmatpush.bf16.xpose.msra.mxu0 %v1953
        %1964 = vmatpush.bf16.xpose.msra.mxu0 %v1950
        %1965 = vmatpush.bf16.xpose.msra.mxu0 %v1947
        %1966 = vmatmul.bf16.gmra.mxu0 %v1944
        %v1967 = vpop.f32.mrf.mxu0
        %v1968 = vadd.f32 0.0, %v1967
        %v1969 = vpop.f32.mrf.mxu0
        %1970 = vdwg.mxu0
        %1971 = vrot.lane.b32.xlu0 %v1531, 108
        %v1972 = vpop.permute.xlu0 %1971
        %1973 = vrot.lane.b32.xlu0 %v1532, 108
        %v1974 = vpop.permute.xlu0 %1973
        %1975 = vrot.lane.b32.xlu0 %v1533, 108
        %v1976 = vpop.permute.xlu0 %1975
        %1977 = vrot.lane.b32.xlu0 %v1534, 108
        %v1978 = vpop.permute.xlu0 %1977
        %v1980 = vunpack.c.l.b16 %v1505
        %v1981 = vpack.c.b16 %v1980, %v1980
        %v1982 = vrot.slane %v1981, 2
        %v1984 = vsel %vm574, %v1972, 0
        %v1987 = vsel %vm574, %v1974, 0
        %v1990 = vsel %vm574, %v1976, 0
        %v1993 = vsel %vm574, %v1978, 0
        %v1996 = vsel %vm587, %v1982, 0
        %1998 = vmatpush.bf16.msra.mxu0 0
        %1999 = vmatpush.bf16.msra.mxu0 0
        %2000 = vmatpush.bf16.msra.mxu0 0
        %2001 = vmatpush.bf16.msra.mxu0 0
        %2002 = vmatpush.bf16.msra.mxu0 0
        %2003 = vmatpush.bf16.msra.mxu0 0
        %2004 = vmatpush.bf16.msra.mxu0 0
        %2005 = vmatpush.bf16.msra.mxu0 %v1996
        %2006 = vmatmul.bf16.gmra.mxu0 %v1984
        %v2007 = vpop.f32.mrf.mxu0
        %v2008 = vadd.f32 0.0, %v2007
        %v2009 = vpop.f32.mrf.mxu0
        %v2010 = vadd.f32 0.0, %v2009
        %2011 = vmatmul.bf16.gmra.mxu0 %v1987
        %v2012 = vpop.f32.mrf.mxu0
        %v2013 = vadd.f32 0.0, %v2012
        %v2014 = vpop.f32.mrf.mxu0
        %v2015 = vadd.f32 0.0, %v2014
        %2016 = vmatmul.bf16.gmra.mxu0 %v1990
        %v2017 = vpop.f32.mrf.mxu0
        %v2018 = vadd.f32 0.0, %v2017
        %v2019 = vpop.f32.mrf.mxu0
        %v2020 = vadd.f32 0.0, %v2019
        %2021 = vmatmul.bf16.gmra.mxu0 %v1993
        %v2022 = vpop.f32.mrf.mxu0
        %v2023 = vadd.f32 0.0, %v2022
        %v2024 = vpop.f32.mrf.mxu0
        %v2025 = vadd.f32 0.0, %v2024
        %2026 = vdwg.mxu0
        %v2027 = vpack.c.bf16 %v2010, %v2008
        %v2028 = vpack.c.bf16 %v2015, %v2013
        %v2029 = vpack.c.bf16 %v2020, %v2018
        %v2030 = vpack.c.bf16 %v2025, %v2023
        %v2032 = vunpack.c.l.b16 %v1509
        %v2033 = vpack.c.b16 %v2032, %v2032
        %v2034 = vrot.slane %v2033, 2
        %v2036 = vsel %vm624, %v2034, 0
        %v2039 = vsel %vm624, %v2027, 0
        %v2042 = vsel %vm624, %v2028, 0
        %v2045 = vsel %vm624, %v2029, 0
        %v2048 = vsel %vm624, %v2030, 0
        %2050 = vmatpush.bf16.xpose.msra.mxu0 0
        %2051 = vmatpush.bf16.xpose.msra.mxu0 0
        %2052 = vmatpush.bf16.xpose.msra.mxu0 0
        %2053 = vmatpush.bf16.xpose.msra.mxu0 0
        %2054 = vmatpush.bf16.xpose.msra.mxu0 %v2048
        %2055 = vmatpush.bf16.xpose.msra.mxu0 %v2045
        %2056 = vmatpush.bf16.xpose.msra.mxu0 %v2042
        %2057 = vmatpush.bf16.xpose.msra.mxu0 %v2039
        %2058 = vmatmul.bf16.gmra.mxu0 %v2036
        %v2059 = vpop.f32.mrf.mxu0
        %v2060 = vadd.f32 0.0, %v2059
        %v2061 = vpop.f32.mrf.mxu0
        %2062 = vdwg.mxu0
        %2063 = vrot.lane.b32.xlu0 %v1531, 104
        %v2064 = vpop.permute.xlu0 %2063
        %2065 = vrot.lane.b32.xlu0 %v1532, 104
        %v2066 = vpop.permute.xlu0 %2065
        %2067 = vrot.lane.b32.xlu0 %v1533, 104
        %v2068 = vpop.permute.xlu0 %2067
        %2069 = vrot.lane.b32.xlu0 %v1534, 104
        %v2070 = vpop.permute.xlu0 %2069
        %v2072 = vsel %vm574, %v2064, 0
        %v2075 = vsel %vm574, %v2066, 0
        %v2078 = vsel %vm574, %v2068, 0
        %v2081 = vsel %vm574, %v2070, 0
        %v2084 = vsel %vm587, %v1506, 0
        %2086 = vmatpush.bf16.msra.mxu0 0
        %2087 = vmatpush.bf16.msra.mxu0 0
        %2088 = vmatpush.bf16.msra.mxu0 0
        %2089 = vmatpush.bf16.msra.mxu0 0
        %2090 = vmatpush.bf16.msra.mxu0 0
        %2091 = vmatpush.bf16.msra.mxu0 0
        %2092 = vmatpush.bf16.msra.mxu0 0
        %2093 = vmatpush.bf16.msra.mxu0 %v2084
        %2094 = vmatmul.bf16.gmra.mxu0 %v2072
        %v2095 = vpop.f32.mrf.mxu0
        %v2096 = vadd.f32 0.0, %v2095
        %v2097 = vpop.f32.mrf.mxu0
        %v2098 = vadd.f32 0.0, %v2097
        %2099 = vmatmul.bf16.gmra.mxu0 %v2075
        %v2100 = vpop.f32.mrf.mxu0
        %v2101 = vadd.f32 0.0, %v2100
        %v2102 = vpop.f32.mrf.mxu0
        %v2103 = vadd.f32 0.0, %v2102
        %2104 = vmatmul.bf16.gmra.mxu0 %v2078
        %v2105 = vpop.f32.mrf.mxu0
        %v2106 = vadd.f32 0.0, %v2105
        %v2107 = vpop.f32.mrf.mxu0
        %v2108 = vadd.f32 0.0, %v2107
        %2109 = vmatmul.bf16.gmra.mxu0 %v2081
        %v2110 = vpop.f32.mrf.mxu0
        %v2111 = vadd.f32 0.0, %v2110
        %v2112 = vpop.f32.mrf.mxu0
        %v2113 = vadd.f32 0.0, %v2112
        %2114 = vdwg.mxu0
        %v2115 = vpack.c.bf16 %v2098, %v2096
        %v2116 = vpack.c.bf16 %v2103, %v2101
        %v2117 = vpack.c.bf16 %v2108, %v2106
        %v2118 = vpack.c.bf16 %v2113, %v2111
        %v2120 = vsel %vm624, %v1510, 0
        %v2123 = vsel %vm624, %v2115, 0
        %v2126 = vsel %vm624, %v2116, 0
        %v2129 = vsel %vm624, %v2117, 0
        %v2132 = vsel %vm624, %v2118, 0
        %2134 = vmatpush.bf16.xpose.msra.mxu0 0
        %2135 = vmatpush.bf16.xpose.msra.mxu0 0
        %2136 = vmatpush.bf16.xpose.msra.mxu0 0
        %2137 = vmatpush.bf16.xpose.msra.mxu0 0
        %2138 = vmatpush.bf16.xpose.msra.mxu0 %v2132
        %2139 = vmatpush.bf16.xpose.msra.mxu0 %v2129
        %2140 = vmatpush.bf16.xpose.msra.mxu0 %v2126
        %2141 = vmatpush.bf16.xpose.msra.mxu0 %v2123
        %2142 = vmatmul.bf16.gmra.mxu0 %v2120
        %v2143 = vpop.f32.mrf.mxu0
        %v2144 = vadd.f32 0.0, %v2143
        %v2145 = vpop.f32.mrf.mxu0
        %2146 = vdwg.mxu0
        %2147 = vrot.lane.b32.xlu0 %v1531, 100
        %v2148 = vpop.permute.xlu0 %2147
        %2149 = vrot.lane.b32.xlu0 %v1532, 100
        %v2150 = vpop.permute.xlu0 %2149
        %2151 = vrot.lane.b32.xlu0 %v1533, 100
        %v2152 = vpop.permute.xlu0 %2151
        %2153 = vrot.lane.b32.xlu0 %v1534, 100
        %v2154 = vpop.permute.xlu0 %2153
        %v2156 = vunpack.c.l.b16 %v1506
        %v2157 = vpack.c.b16 %v2156, %v2156
        %v2158 = vrot.slane %v2157, 2
        %v2160 = vsel %vm574, %v2148, 0
        %v2163 = vsel %vm574, %v2150, 0
        %v2166 = vsel %vm574, %v2152, 0
        %v2169 = vsel %vm574, %v2154, 0
        %v2172 = vsel %vm587, %v2158, 0
        %2174 = vmatpush.bf16.msra.mxu0 0
        %2175 = vmatpush.bf16.msra.mxu0 0
        %2176 = vmatpush.bf16.msra.mxu0 0
        %2177 = vmatpush.bf16.msra.mxu0 0
        %2178 = vmatpush.bf16.msra.mxu0 0
        %2179 = vmatpush.bf16.msra.mxu0 0
        %2180 = vmatpush.bf16.msra.mxu0 0
        %2181 = vmatpush.bf16.msra.mxu0 %v2172
        %2182 = vmatmul.bf16.gmra.mxu0 %v2160
        %v2183 = vpop.f32.mrf.mxu0
        %v2184 = vadd.f32 0.0, %v2183
        %v2185 = vpop.f32.mrf.mxu0
        %v2186 = vadd.f32 0.0, %v2185
        %2187 = vmatmul.bf16.gmra.mxu0 %v2163
        %v2188 = vpop.f32.mrf.mxu0
        %v2189 = vadd.f32 0.0, %v2188
        %v2190 = vpop.f32.mrf.mxu0
        %v2191 = vadd.f32 0.0, %v2190
        %2192 = vmatmul.bf16.gmra.mxu0 %v2166
        %v2193 = vpop.f32.mrf.mxu0
        %v2194 = vadd.f32 0.0, %v2193
        %v2195 = vpop.f32.mrf.mxu0
        %v2196 = vadd.f32 0.0, %v2195
        %2197 = vmatmul.bf16.gmra.mxu0 %v2169
        %v2198 = vpop.f32.mrf.mxu0
        %v2199 = vadd.f32 0.0, %v2198
        %v2200 = vpop.f32.mrf.mxu0
        %v2201 = vadd.f32 0.0, %v2200
        %2202 = vdwg.mxu0
        %v2203 = vpack.c.bf16 %v2186, %v2184
        %v2204 = vpack.c.bf16 %v2191, %v2189
        %v2205 = vpack.c.bf16 %v2196, %v2194
        %v2206 = vpack.c.bf16 %v2201, %v2199
        %v2208 = vunpack.c.l.b16 %v1510
        %v2209 = vpack.c.b16 %v2208, %v2208
        %v2210 = vrot.slane %v2209, 2
        %v2212 = vsel %vm624, %v2210, 0
        %v2215 = vsel %vm624, %v2203, 0
        %v2218 = vsel %vm624, %v2204, 0
        %v2221 = vsel %vm624, %v2205, 0
        %v2224 = vsel %vm624, %v2206, 0
        %2226 = vmatpush.bf16.xpose.msra.mxu0 0
        %2227 = vmatpush.bf16.xpose.msra.mxu0 0
        %2228 = vmatpush.bf16.xpose.msra.mxu0 0
        %2229 = vmatpush.bf16.xpose.msra.mxu0 0
        %2230 = vmatpush.bf16.xpose.msra.mxu0 %v2224
        %2231 = vmatpush.bf16.xpose.msra.mxu0 %v2221
        %2232 = vmatpush.bf16.xpose.msra.mxu0 %v2218
        %2233 = vmatpush.bf16.xpose.msra.mxu0 %v2215
        %2234 = vmatmul.bf16.gmra.mxu0 %v2212
        %v2235 = vpop.f32.mrf.mxu0
        %v2236 = vadd.f32 0.0, %v2235
        %v2237 = vpop.f32.mrf.mxu0
        %2238 = vdwg.mxu0
        %v2240 = vrot.slane %v1708, 4
        %v2243 = vrot.slane %v1884, 4
        %v2246 = vrot.slane %v2060, 4
        %v2249 = vrot.slane %v2236, 4
        %v2251 = vsel %vm1289, %v1612, %v2240
        %v2252 = vsel %vm1289, %v1792, %v2243
        %v2253 = vsel %vm1289, %v1968, %v2246
        %v2254 = vsel %vm1289, %v2144, %v2249
        %v2255 = vadd.f32 %v1312, %v2251
        %v2256 = vadd.f32 %v1313, %v2252
        %v2257 = vadd.f32 %v1314, %v2253
        %v2258 = vadd.f32 %v1315, %v2254
        %v2259 = vmul.f32 %v2255, 0.5
        %v2260 = vmul.f32 %v2256, 0.5
        %v2261 = vmul.f32 %v2257, 0.5
        %v2262 = vmul.f32 %v2258, 0.5
        %vm2263 = vcmp.ge.f32.partialorder %v2259, 4.0
        %vm2264 = vcmp.ge.f32.partialorder %v2260, 4.0
        %vm2265 = vcmp.ge.f32.partialorder %v2261, 4.0
        %vm2266 = vcmp.ge.f32.partialorder %v2262, 4.0
        %v2267 = vsel %vm2263, 1.0, 0.0
        %v2268 = vsel %vm2264, 1.0, 0.0
        %v2269 = vsel %vm2265, 1.0, 0.0
        %v2270 = vsel %vm2266, 1.0, 0.0
        %v2271 = vpack.c.bf16 %v2268, %v2267
        %v2272 = vpack.c.bf16 %v2270, %v2269
        %2273 = vmatpush.bf16.msra.mxu0 0
        %2274 = vmatpush.bf16.msra.mxu0 0
        %2275 = vmatpush.bf16.msra.mxu0 0
        %2276 = vmatpush.bf16.msra.mxu0 0
        %2277 = vmatpush.bf16.msra.mxu0 0
        %2278 = vmatpush.bf16.msra.mxu0 0
        %2279 = vmatpush.bf16.msra.mxu0 %v2272
        %2280 = vmatpush.bf16.msra.mxu0 %v2271
        %2281 = vmatmul.f32.gmra.mxu0 %v1337
        %v2282 = vpop.f32.mrf.mxu0
        %v2283 = vadd.f32 %v1319, %v2282
        %2284 = vmatmul.f32.gmra.mxu0 %v1340
        %v2285 = vpop.f32.mrf.mxu0
        %v2286 = vadd.f32 %v1324, %v2285
        %2287 = vmatmul.f32.gmra.mxu0 %v1343
        %v2288 = vpop.f32.mrf.mxu0
        %v2289 = vadd.f32 %v1329, %v2288
        %2290 = vmatmul.f32.gmra.mxu0 %v1346
        %v2291 = vpop.f32.mrf.mxu0
        %v2292 = vadd.f32 %v1334, %v2291
        %2293 = vdwg.mxu0
        %v2294 = vadd.f32 %v1385, %v2283
        %v2295 = vadd.f32 %v1386, %v2286
        %v2296 = vadd.f32 %v1387, %v2289
        %v2297 = vadd.f32 %v1388, %v2292
        %v2298 = vmul.f32 %v2294, 0.5
        %v2299 = vmul.f32 %v2295, 0.5
        %v2300 = vmul.f32 %v2296, 0.5
        %v2301 = vmul.f32 %v2297, 0.5
        %vm2302 = vcmp.ge.f32.partialorder %v2298, 1.0
        %vm2303 = vcmp.ge.f32.partialorder %v2299, 1.0
        %vm2304 = vcmp.ge.f32.partialorder %v2300, 1.0
        %vm2305 = vcmp.ge.f32.partialorder %v2301, 1.0
        %v2306 = vsel %vm2302, 1.0, 0.0
        %v2307 = vsel %vm2303, 1.0, 0.0
        %v2308 = vsel %vm2304, 1.0, 0.0
        %v2309 = vsel %vm2305, 1.0, 0.0
        %s2310 = scalar_lea.vmem %s286, 32 [#allocation3]
        %2311 = vst.msk [vmem:[%s2310] sm:$0xff] %vm624, %v2306
        %2312 = vst.msk [vmem:[%s2310 + $0x8] sm:$0xff] %vm624, %v2307
        %2313 = vst.msk [vmem:[%s2310 + $0x10] sm:$0xff] %vm624, %v2308
        %2314 = vst.msk [vmem:[%s2310 + $0x18] sm:$0xff] %vm624, %v2309
        %s2315 = sand.u32 %s137, 1
        %s2316 = scalar_lea.sflag [#allocation4], %s2315
        %s2317 = sand.u32 %s137, 1
        %s2318 = smul.addr %s2317, 64
        %s2319 = scalar_lea.vmem [#allocation3], %s2318
        // Predicated region
        $region79: #{tpu_custom_call.1} parent=73 // pred_check
          %p2320 = pneg %p147
        $region80: #{tpu_custom_call.1} parent=73 // pred_check_branch
          %2322 = sbr.rel (%p2320) target = $region82
        $region81: #{tpu_custom_call.1} parent=73 // pred_region
          #allocation6 [shape = 'u32[6]{0}', space=smem, size = 0x18, scoped, tag = 'DMA stride descriptor']
          %2324 = vsyncadd %s2316, 0
          %s2325 = smul.addr %s19, 4
          %s2326 = smul.addr %s2325, 8
          %s2327 = scalar_lea.hbm %s5, %s2326
          %s2329 = sshll.u32 1, 14
          %s2330 = sxor.u32 4294967295, %s2329
          %s2333 = sshll.u32 7, 18
          %s2334 = sxor.u32 4294967295, %s2333
          %s2335 = sand.u32 0, %s2334
          %s2337 = sor.u32 %s2335, 0
          %s2338 = sshll.u32 %s2319, 4
          %s2339 = int_to_ptr.vmem [resolvable:$true] %s2338
          %s2340 = sshll.u32 %s2327, 4
          %s2341 = int_to_ptr.hbm [resolvable:$true] %s2340
          %2347 = sst [smem:[#allocation6]] 512
          %s2348 = scalar_lea.smem [#allocation6], 1
          %2349 = sst [smem:[%s2348]] 1024
          %s2350 = scalar_lea.smem [#allocation6], 2
          %2351 = sst [smem:[%s2350]] 4
          %s2352 = scalar_lea.smem [#allocation6], 3
          %2353 = sst [smem:[%s2352]] 128
          %s2354 = scalar_lea.smem [#allocation6], 4
          %2355 = sst [smem:[%s2354]] 128
          %s2356 = scalar_lea.smem [#allocation6], 5
          %2357 = sst [smem:[%s2356]] 8
          %2359 = dma.general %s2339, 1024, %s2341, %s2316, [#allocation5], [#allocation6], %s2337, 0
        $region82: #{tpu_custom_call.1} parent=73 // pred_fallthru
          _
      $region74: #{tpu_custom_call.1} parent=5 // pred_fallthru
        _
      %p2360 = scmp.le.s32.totalorder 2, %s14
      // Predicated region
      $region83: #{tpu_custom_call.1} parent=5 // pred_check
        %p2361 = pneg %p2360
      $region84: #{tpu_custom_call.1} parent=5 // pred_check_branch
        %2363 = sbr.rel (%p2361) target = $region86
      $region85: #{tpu_custom_call.1} parent=5 // pred_region
        %s2364 = ssub.s32 %s14, 2
        // Predicated region
        $region87: #{tpu_custom_call.1} parent=85 // pred_check
          %p2365 = pneg %p153
        $region88: #{tpu_custom_call.1} parent=85 // pred_check_branch
          %2367 = sbr.rel (%p2365) target = $region90
        $region89: #{tpu_custom_call.1} parent=85 // pred_region
          %s2368 = sand.u32 %s138, 1
          %s2369 = scalar_lea.sflag [#allocation4], %s2368
          %s2370 = sand.u32 %s138, 1
          %s2371 = smul.addr %s2370, 64
          %s2372 = scalar_lea.vmem [#allocation3], %s2371
          %2374 = dma.done %s2369, 1024
        $region90: #{tpu_custom_call.1} parent=85 // pred_fallthru
          _
      $region86: #{tpu_custom_call.1} parent=5 // pred_fallthru
        _
    $region6: #{tpu_custom_call.1} parent=1 // loop_footer
      %s18 = sadd.s32 1, %s14
    $region7: #{tpu_custom_call.1} parent=1 // loop_footer_branch
      %13 = sbr.rel target = $region3
    $region8: #{tpu_custom_call.1} parent=1 // loop_exit
      _
    %2375 = vsyncpa [#allocation4], 1
    %s2376 = scalar_lea.sflag [#allocation4], 1
    %2377 = vsyncpa %s2376, 1

</llo_original>
